<compile_context>
chip_gen: v6e
topology: v6e:2x2x1
jax: 0.10.0
libtpu: 0.0.40
codegen_flags: <defaults>
</compile_context>

<pallas_src>
import functools
import math

import jax
import jax.numpy as jnp
from jax.experimental import pallas as pl
from jax.experimental.pallas import tpu as pltpu

LANE = 128


def _round_up(v, m):
    return ((v + m - 1) // m) * m


def gcn_layer_kernel(a_ref, x_ref, w_ref, b_ref, o_ref, acc_ref, *, apply_relu):
    """One GCNConv layer tile: acc += A[i,k] @ (X[k] @ W); finalize: +bias (+relu)."""
    k = pl.program_id(1)

    @pl.when(k == 0)
    def _():
        acc_ref[...] = jnp.zeros_like(acc_ref)

    # Tiny feature matmul fused per k-step (avoids an HBM round-trip for X @ W).
    z = jnp.dot(x_ref[...], w_ref[...], preferred_element_type=jnp.float32)
    acc_ref[...] += jnp.dot(
        a_ref[...], z.astype(a_ref.dtype), preferred_element_type=jnp.float32
    )

    @pl.when(k == pl.num_programs(1) - 1)
    def _():
        y = acc_ref[...] + b_ref[...]
        if apply_relu:
            y = jnp.maximum(y, 0.0)
        o_ref[...] = y.astype(o_ref.dtype)


def _gcn_layer(a_p, x_p, w_p, b_p, *, tm, tk, apply_relu, out_dtype):
    n_p = a_p.shape[0]
    c_in_p = x_p.shape[1]
    c_out_p = w_p.shape[1]
    grid = (n_p // tm, n_p // tk)

    kernel = functools.partial(gcn_layer_kernel, apply_relu=apply_relu)

    return pl.pallas_call(
        kernel,
        out_shape=jax.ShapeDtypeStruct((n_p, c_out_p), out_dtype),
        grid_spec=pltpu.PrefetchScalarGridSpec(
            num_scalar_prefetch=0,
            grid=grid,
            in_specs=[
                pl.BlockSpec((tm, tk), lambda i, k: (i, k)),           # A_hat tile
                pl.BlockSpec((tk, c_in_p), lambda i, k: (k, 0)),       # X / H tile
                pl.BlockSpec((c_in_p, c_out_p), lambda i, k: (0, 0)),  # W (resident)
                pl.BlockSpec((1, c_out_p), lambda i, k: (0, 0)),       # b (resident)
            ],
            out_specs=pl.BlockSpec((tm, c_out_p), lambda i, k: (i, 0)),
            scratch_shapes=[pltpu.VMEM((tm, c_out_p), jnp.float32)],
        ),
        compiler_params=pltpu.CompilerParams(
            dimension_semantics=("parallel", "arbitrary"),
            vmem_limit_bytes=32 * 1024 * 1024,
        ),
    )(a_p, x_p, w_p, b_p)


def gcn_forward(a_hat, x, w1, b1, w2, b2, *, tm=256, tk=512):
    """GCN forward: relu(A@(X@W1)+b1) -> dropout(eval, identity) -> A@(H@W2)+b2."""
    n, in_c = x.shape
    hid_c = w1.shape[1]
    out_c = w2.shape[1]

    # Lane-dense feature padding and node padding to a tile multiple.
    c_in_p = _round_up(in_c, LANE)
    c_hid_p = _round_up(hid_c, LANE)
    c_out_p = _round_up(out_c, LANE)
    n_blk = math.lcm(tm, tk)
    n_p = _round_up(max(n, n_blk), n_blk)

    a_p = jnp.zeros((n_p, n_p), jnp.bfloat16).at[:n, :n].set(
        a_hat.astype(jnp.bfloat16))
    x_p = jnp.zeros((n_p, c_in_p), jnp.bfloat16).at[:n, :in_c].set(
        x.astype(jnp.bfloat16))
    w1_p = jnp.zeros((c_in_p, c_hid_p), jnp.bfloat16).at[:in_c, :hid_c].set(
        w1.astype(jnp.bfloat16))
    b1_p = jnp.zeros((1, c_hid_p), jnp.float32).at[:, :hid_c].set(
        jnp.reshape(b1, (1, hid_c)).astype(jnp.float32))
    w2_p = jnp.zeros((c_hid_p, c_out_p), jnp.bfloat16).at[:hid_c, :out_c].set(
        w2.astype(jnp.bfloat16))
    b2_p = jnp.zeros((1, c_out_p), jnp.float32).at[:, :out_c].set(
        jnp.reshape(b2, (1, out_c)).astype(jnp.float32))

    # Layer 1: H = relu(A @ (X @ W1) + b1); dropout(p=0.5) in eval mode == identity.
    h_p = _gcn_layer(a_p, x_p, w1_p, b1_p, tm=tm, tk=tk,
                     apply_relu=True, out_dtype=jnp.bfloat16)
    # Layer 2: Y = A @ (H @ W2) + b2
    y_p = _gcn_layer(a_p, h_p, w2_p, b2_p, tm=tm, tk=tk,
                     apply_relu=False, out_dtype=jnp.float32)
    return y_p[:n, :out_c]


def normalized_adjacency(edge_index, num_nodes):
    """Dense D^{-1/2} (A + I) D^{-1/2}, matching GCNConv default normalization.

    Note: assumes edge_index contains no duplicate edges and no pre-existing
    self loops (true for the ring graph below), matching PyG's gcn_norm.
    """
    src = edge_index[0]
    dst = edge_index[1]
    adj = jnp.zeros((num_nodes, num_nodes), jnp.float32)
    adj = adj.at[dst, src].add(1.0)                      # message src -> dst
    adj = adj + jnp.eye(num_nodes, dtype=jnp.float32)    # self loops
    deg = adj.sum(axis=1)
    d_inv_sqrt = jax.lax.rsqrt(jnp.maximum(deg, 1e-12))
    return d_inv_sqrt[:, None] * adj * d_inv_sqrt[None, :]


def glorot(key, shape):
    fan_in, fan_out = shape
    limit = jnp.sqrt(6.0 / (fan_in + fan_out))
    return jax.random.uniform(key, shape, jnp.float32, -limit, limit)


if __name__ == "__main__":
    # Small, forward-consistent shapes.
    N = 16            # number of graph nodes
    IN_C = 8          # in_channels
    HID_C = 32        # hidden_channels
    OUT_C = 4         # out_channels

    key = jax.random.PRNGKey(0)
    k_x, k_w1, k_w2 = jax.random.split(key, 3)

    x = jax.random.normal(k_x, (N, IN_C), jnp.float32)

    # Deterministic ring graph (both directions), edge_index: [2, E].
    idx = jnp.arange(N)
    src = jnp.concatenate([idx, (idx + 1) % N])
    dst = jnp.concatenate([(idx + 1) % N, idx])
    edge_index = jnp.stack([src, dst], axis=0)

    # Deterministic parameters (GCNConv: weight [in, out], bias [out]).
    w1 = glorot(k_w1, (IN_C, HID_C))
    b1 = jnp.zeros((HID_C,), jnp.float32)
    w2 = glorot(k_w2, (HID_C, OUT_C))
    b2 = jnp.zeros((OUT_C,), jnp.float32)

    a_hat = normalized_adjacency(edge_index, N)

    out = jax.block_until_ready(gcn_forward(a_hat, x, w1, b1, w2, b2))
    assert out.shape == (N, OUT_C)

    # Reference 1 (tight): mirror the kernel's bf16 quantization points exactly.
    mm = functools.partial(jnp.matmul, precision=jax.lax.Precision.HIGHEST)

    def q(v):  # bf16 round-trip
        return v.astype(jnp.bfloat16).astype(jnp.float32)

    a_q, x_q, w1_q, w2_q = q(a_hat), q(x), q(w1), q(w2)
    ref_h = jnp.maximum(mm(a_q, q(mm(x_q, w1_q))) + b1[None, :], 0.0)
    ref_q = mm(a_q, q(mm(q(ref_h), w2_q))) + b2[None, :]
    assert jnp.allclose(out, ref_q, atol=5e-3, rtol=5e-3), (
        float(jnp.max(jnp.abs(out - ref_q))))

    # Reference 2 (loose): pure f32 math; slack covers bf16 operand rounding.
    ref_f32 = mm(a_hat, mm(jnp.maximum(mm(a_hat, mm(x, w1)) + b1[None, :], 0.0), w2)) \
        + b2[None, :]
    assert jnp.allclose(out, ref_f32, atol=5e-2, rtol=5e-2), (
        float(jnp.max(jnp.abs(out - ref_f32))))

    print("KERNEL_OK")
</pallas_src>

<mosaic_0001>
module attributes {stable_mosaic.version = 11 : i64} {
  func.func @gcn_layer_kernel(%arg0: i32, %arg1: i32, %arg2: memref<256x512xbf16, #tpu.memory_space<vmem>>, %arg3: memref<512x128xbf16, #tpu.memory_space<vmem>>, %arg4: memref<128x128xbf16, #tpu.memory_space<vmem>>, %arg5: memref<1x128xf32, #tpu.memory_space<vmem>>, %arg6: memref<256x128xbf16, #tpu.memory_space<vmem>>, %arg7: memref<256x128xf32, #tpu.memory_space<vmem>>) attributes {dimension_semantics = [#tpu.dimension_semantics<parallel>, #tpu.dimension_semantics<arbitrary>], iteration_bounds = array<i64: 2, 1>, scalar_prefetch = 0 : i64, scratch_operands = 1 : i64, tpu.core_type = #tpu.core_type<tc>, window_params = [{transform_indices = @transform_0, window_bounds = array<i64: 256, 512>}, {transform_indices = @transform_1, window_bounds = array<i64: 512, 128>}, {pipeline_mode = #tpu.pipeline_mode<synchronous>, transform_indices = @transform_2, window_bounds = array<i64: 128, 128>}, {pipeline_mode = #tpu.pipeline_mode<synchronous>, transform_indices = @transform_3, window_bounds = array<i64: 1, 128>}, {transform_indices = @transform_4, window_bounds = array<i64: 256, 128>}]} {
    %c0_i32 = arith.constant 0 : i32
    %0 = arith.cmpi eq, %arg1, %c0_i32 : i32
    %1 = arith.extui %0 : i1 to i32
    %c0_i32_0 = arith.constant 0 : i32
    %2 = arith.cmpi ne, %1, %c0_i32_0 : i32
    scf.if %2 {
      %cst_13 = arith.constant 0.000000e+00 : f32
      %15 = vector.broadcast %cst_13 : f32 to vector<256x128xf32>
      %c0_14 = arith.constant 0 : index
      %c0_15 = arith.constant 0 : index
      %16 = vector.load %arg7[%c0_14, %c0_15] : memref<256x128xf32, #tpu.memory_space<vmem>>, vector<256x128xf32>
      tpu.vector_store %arg7[%c0_14, %c0_15], %15 {strides = array<i32>} : memref<256x128xf32, #tpu.memory_space<vmem>>, vector<256x128xf32>,
    } else {
    }
    %c0 = arith.constant 0 : index
    %c0_1 = arith.constant 0 : index
    %3 = vector.load %arg3[%c0, %c0_1] : memref<512x128xbf16, #tpu.memory_space<vmem>>, vector<512x128xbf16>
    %c0_2 = arith.constant 0 : index
    %c0_3 = arith.constant 0 : index
    %4 = vector.load %arg4[%c0_2, %c0_3] : memref<128x128xbf16, #tpu.memory_space<vmem>>, vector<128x128xbf16>
    %cst = arith.constant dense<0.000000e+00> : vector<512x128xf32>
    %5 = tpu.matmul %3, %4, %cst {dimension_numbers = #tpu.dot_dimension_numbers<[1], [0], [0], [1], [0, 0, 1, 1], [], []>} : vector<512x128xbf16>, vector<128x128xbf16>, vector<512x128xf32> -> vector<512x128xf32>
    %c0_4 = arith.constant 0 : index
    %c0_5 = arith.constant 0 : index
    %6 = vector.load %arg7[%c0_4, %c0_5] : memref<256x128xf32, #tpu.memory_space<vmem>>, vector<256x128xf32>
    %c0_6 = arith.constant 0 : index
    %c0_7 = arith.constant 0 : index
    %7 = vector.load %arg2[%c0_6, %c0_7] : memref<256x512xbf16, #tpu.memory_space<vmem>>, vector<256x512xbf16>
    %8 = arith.truncf %5 : vector<512x128xf32> to vector<512x128xbf16>
    %cst_8 = arith.constant dense<0.000000e+00> : vector<256x128xf32>
    %9 = tpu.matmul %7, %8, %cst_8 {dimension_numbers = #tpu.dot_dimension_numbers<[1], [0], [0], [1], [0, 0, 1, 1], [], []>} : vector<256x512xbf16>, vector<512x128xbf16>, vector<256x128xf32> -> vector<256x128xf32>
    %10 = arith.addf %6, %9 : vector<256x128xf32>
    %c0_9 = arith.constant 0 : index
    %c0_10 = arith.constant 0 : index
    %11 = vector.load %arg7[%c0_9, %c0_10] : memref<256x128xf32, #tpu.memory_space<vmem>>, vector<256x128xf32>
    tpu.vector_store %arg7[%c0_9, %c0_10], %10 {strides = array<i32>} : memref<256x128xf32, #tpu.memory_space<vmem>>, vector<256x128xf32>,
    %c0_i32_11 = arith.constant 0 : i32
    %12 = arith.cmpi eq, %arg1, %c0_i32_11 : i32
    %13 = arith.extui %12 : i1 to i32
    %c0_i32_12 = arith.constant 0 : i32
    %14 = arith.cmpi ne, %13, %c0_i32_12 : i32
    scf.if %14 {
      %c0_13 = arith.constant 0 : index
      %c0_14 = arith.constant 0 : index
      %15 = vector.load %arg7[%c0_13, %c0_14] : memref<256x128xf32, #tpu.memory_space<vmem>>, vector<256x128xf32>
      %c0_15 = arith.constant 0 : index
      %c0_16 = arith.constant 0 : index
      %16 = vector.load %arg5[%c0_15, %c0_16] : memref<1x128xf32, #tpu.memory_space<vmem>>, vector<1x128xf32>
      %17 = vector.broadcast %16 : vector<1x128xf32> to vector<256x128xf32>
      %18 = arith.addf %15, %17 : vector<256x128xf32>
      %cst_17 = arith.constant 0.000000e+00 : f32
      %19 = vector.broadcast %cst_17 : f32 to vector<256x128xf32>
      %20 = arith.maximumf %18, %19 : vector<256x128xf32>
      %21 = arith.truncf %20 : vector<256x128xf32> to vector<256x128xbf16>
      %c0_18 = arith.constant 0 : index
      %c0_19 = arith.constant 0 : index
      %22 = vector.load %arg6[%c0_18, %c0_19] : memref<256x128xbf16, #tpu.memory_space<vmem>>, vector<256x128xbf16>
      tpu.vector_store %arg6[%c0_18, %c0_19], %21 {strides = array<i32>} : memref<256x128xbf16, #tpu.memory_space<vmem>>, vector<256x128xbf16>,
    } else {
    }
    return
  }
  func.func @transform_0(%arg0: i32, %arg1: i32) -> (i32, i32) {
    %c0_i32 = arith.constant 0 : i32
    return %arg0, %arg1 : i32, i32
  }
  func.func @transform_1(%arg0: i32, %arg1: i32) -> (i32, i32) {
    %c0_i32 = arith.constant 0 : i32
    %c0_i32_0 = arith.constant 0 : i32
    return %arg1, %c0_i32 : i32, i32
  }
  func.func @transform_2(%arg0: i32, %arg1: i32) -> (i32, i32) {
    %c0_i32 = arith.constant 0 : i32
    %c0_i32_0 = arith.constant 0 : i32
    %c0_i32_1 = arith.constant 0 : i32
    return %c0_i32, %c0_i32_0 : i32, i32
  }
  func.func @transform_3(%arg0: i32, %arg1: i32) -> (i32, i32) {
    %c0_i32 = arith.constant 0 : i32
    %c0_i32_0 = arith.constant 0 : i32
    %c0_i32_1 = arith.constant 0 : i32
    return %c0_i32, %c0_i32_0 : i32, i32
  }
  func.func @transform_4(%arg0: i32, %arg1: i32) -> (i32, i32) {
    %c0_i32 = arith.constant 0 : i32
    %c0_i32_0 = arith.constant 0 : i32
    return %arg0, %c0_i32 : i32, i32
  }
}

</mosaic_0001>

<llo_original>
// kernel: tpu_custom_call.1
$region0: #{tpu_custom_call.1}
  #allocation0 [shape = 'u32[]', space=smem, size = 0x4, offset = 0x4, fixed_abs, tag = 'smem constant byte address 0x4 - core index']
  #allocation1 [shape = 'u32[144,128]{1,0:T(1,128)}', space=vmem, size = 0x12000, scoped, tag = 'internal scratch']
  #allocation2 [shape = 'f32[256,128]{1,0:T(8,128)}', space=vmem, size = 0x20000, scoped, tag = 'scratch operand']
  %s0 = inlined_call_operand.hbm [shape: bf16[512,512], index: 0, kind: input, shape index: {}]
  %s1 = inlined_call_operand.hbm [shape: bf16[512,128], index: 1, kind: input, shape index: {}]
  %s2 = inlined_call_operand.hbm [shape: bf16[128,128], index: 2, kind: input, shape index: {}]
  %s3 = inlined_call_operand.vmem [shape: f32[1,128], index: 3, kind: input, shape index: {}]
  %s4 = inlined_call_operand.hbm [shape: bf16[512,128], index: 4, kind: output, shape index: {}]
  %s5 = sld [smem:[#allocation0]]
  $region69: #{tpu_custom_call.1} parent=0
    _
  %s7 = ssub.s32 1, %s5
  %s8 = scalar_select 0, %s7, %s5
  $region1: #{tpu_custom_call.1} parent=0
    #allocation3 [shape = 'u8[524288]{0}', space=vmem, size = 0x80000, scoped, tag = 'input window, operand 0']
    #allocation4 [shape = 's32[2]{0}', space=sflag, size = 0x8, scoped, tag = 'scoped memory for tpu_custom_call.1']
    #allocation5 [shape = 's32[2]{0}', space=sflag, size = 0x8, scoped, tag = 'scoped memory for tpu_custom_call.1']
    #allocation6 [shape = 'u8[131072]{0}', space=vmem, size = 0x20000, scoped, tag = 'input window, operand 1, single buffered']
    #allocation7 [shape = 's32[1]{0}', space=sflag, size = 0x4, scoped, tag = 'scoped memory for tpu_custom_call.1']
    #allocation8 [shape = 'u8[32768]{0}', space=vmem, size = 0x8000, scoped, tag = 'input window, operand 2, single buffered']
    #allocation9 [shape = 'u8[131072]{0}', space=vmem, size = 0x20000, scoped, tag = 'output window, operand 0']
    %9 = vsyncpa [#allocation4], 0
    %s10 = scalar_lea.sflag [#allocation4], 1
    %11 = vsyncpa %s10, 0
    %12 = vsyncpa [#allocation7], 0
    %13 = vsyncpa [#allocation5], 0
    %s14 = scalar_lea.sflag [#allocation5], 1
    %15 = vsyncpa %s14, 0
    loop: start=0, step=1, limit=4
    $region2: #{tpu_custom_call.1} parent=1 // loop_pre_header
      _
    $region3: #{tpu_custom_call.1} parent=1 // loop_header
      %s17 = sphi 0, %s21
      %p18 = scmp.ge.s32.totalorder %s17, 4
      %s24 = sphi 0, %s36
      %s25 = sphi 0, %s32
      %s26 = sphi 0, %s24
      %s27 = sphi 0, %s25
      %s28 = sphi 0, %s26
      %s29 = sphi 0, %s27
      %s41 = sphi 0, %s43
      %s44 = sphi 0, %s41
      %s45 = sphi 0, %s44
      %s61 = sphi 0, %s45
      %s67 = sphi 0, %s69
      %s70 = sphi 0, %s67
      %s71 = sphi 0, %s70
      %s87 = sphi 0, %s71
      %s91 = sphi 0, %s91
      %s93 = sphi 0, %s91
      %s94 = sphi 0, %s93
      %s108 = sphi 0, %s94
      %s112 = sphi 0, %s112
      %s114 = sphi 0, %s112
      %s115 = sphi 0, %s114
      %s129 = sphi 0, %s115
      %s135 = sphi 0, %s137
      %s138 = sphi 0, %s135
      %s139 = sphi 0, %s138
      %s155 = sphi 0, %s139
    $region4: #{tpu_custom_call.1} parent=1 // loop_header_branch
      %20 = sbr.rel (%p18) target = $region8
    $region5: #{tpu_custom_call.1} parent=1 // loop_body
      %s22 = ssub.s32 %s17, 1
      %s23 = ssub.s32 %s17, 2
      %s30 = sadd.s32 1, %s25
      %p31 = scmp.ge.s32.totalorder %s30, 1
      %s32 = scalar_select %p31, 0, %s30
      %s33 = sadd.s32 1, %s24
      %s34 = scalar_select %p31, %s33, %s24
      %p35 = scmp.ge.s32.totalorder %s34, 2
      %s36 = scalar_select %p35, 0, %s34
      %s37 = ssub.s32 %s24, %s36
      %s38 = ssub.s32 %s25, %s32
      %s39 = sor.u32 %s37, %s38
      %p40 = scmp.eq.s32.totalorder %s39, 0
      %s42 = sadd.s32 %s41, 1
      %s43 = scalar_select %p40, %s41, %s42
      %p46 = pneg %p40
      %p47 = scmp.eq.s32.totalorder %s17, 1
      %p48 = por %p46, %p47
      %p49 = scmp.ne.s32.totalorder %s41, %s44
      %p50 = scmp.eq.s32.totalorder %s17, 0
      %p51 = por %p49, %p50
      %p52 = scmp.ne.s32.totalorder %s41, %s44
      %p53 = scmp.eq.s32.totalorder %s22, 1
      %p54 = por %p52, %p53
      %p55 = scmp.ne.s32.totalorder %s44, %s45
      %p56 = scmp.eq.s32.totalorder %s22, 0
      %p57 = por %p55, %p56
      %p58 = scmp.ne.s32.totalorder %s44, %s45
      %p59 = scmp.eq.s32.totalorder %s23, 1
      %p60 = por %p58, %p59
      %p62 = scmp.ne.s32.totalorder %s45, %s61
      %p63 = scmp.eq.s32.totalorder %s23, 0
      %p64 = por %p62, %p63
      %s65 = ssub.s32 %s25, %s32
      %p66 = scmp.eq.s32.totalorder %s65, 0
      %s68 = sadd.s32 %s67, 1
      %s69 = scalar_select %p66, %s67, %s68
      %p72 = pneg %p66
      %p73 = scmp.eq.s32.totalorder %s17, 1
      %p74 = por %p72, %p73
      %p75 = scmp.ne.s32.totalorder %s67, %s70
      %p76 = scmp.eq.s32.totalorder %s17, 0
      %p77 = por %p75, %p76
      %p78 = scmp.ne.s32.totalorder %s67, %s70
      %p79 = scmp.eq.s32.totalorder %s22, 1
      %p80 = por %p78, %p79
      %p81 = scmp.ne.s32.totalorder %s70, %s71
      %p82 = scmp.eq.s32.totalorder %s22, 0
      %p83 = por %p81, %p82
      %p84 = scmp.ne.s32.totalorder %s70, %s71
      %p85 = scmp.eq.s32.totalorder %s23, 1
      %p86 = por %p84, %p85
      %p88 = scmp.ne.s32.totalorder %s71, %s87
      %p89 = scmp.eq.s32.totalorder %s23, 0
      %p90 = por %p88, %p89
      %s92 = sadd.s32 %s91, 1
      %p95 = scmp.eq.s32.totalorder %s17, 1
      %p96 = scmp.ne.s32.totalorder %s91, %s93
      %p97 = scmp.eq.s32.totalorder %s17, 0
      %p98 = por %p96, %p97
      %p99 = scmp.ne.s32.totalorder %s91, %s93
      %p100 = scmp.eq.s32.totalorder %s22, 1
      %p101 = por %p99, %p100
      %p102 = scmp.ne.s32.totalorder %s93, %s94
      %p103 = scmp.eq.s32.totalorder %s22, 0
      %p104 = por %p102, %p103
      %p105 = scmp.ne.s32.totalorder %s93, %s94
      %p106 = scmp.eq.s32.totalorder %s23, 1
      %p107 = por %p105, %p106
      %p109 = scmp.ne.s32.totalorder %s94, %s108
      %p110 = scmp.eq.s32.totalorder %s23, 0
      %p111 = por %p109, %p110
      %s113 = sadd.s32 %s112, 1
      %p116 = scmp.eq.s32.totalorder %s17, 1
      %p117 = scmp.ne.s32.totalorder %s112, %s114
      %p118 = scmp.eq.s32.totalorder %s17, 0
      %p119 = por %p117, %p118
      %p120 = scmp.ne.s32.totalorder %s112, %s114
      %p121 = scmp.eq.s32.totalorder %s22, 1
      %p122 = por %p120, %p121
      %p123 = scmp.ne.s32.totalorder %s114, %s115
      %p124 = scmp.eq.s32.totalorder %s22, 0
      %p125 = por %p123, %p124
      %p126 = scmp.ne.s32.totalorder %s114, %s115
      %p127 = scmp.eq.s32.totalorder %s23, 1
      %p128 = por %p126, %p127
      %p130 = scmp.ne.s32.totalorder %s115, %s129
      %p131 = scmp.eq.s32.totalorder %s23, 0
      %p132 = por %p130, %p131
      %s133 = ssub.s32 %s24, %s36
      %p134 = scmp.eq.s32.totalorder %s133, 0
      %s136 = sadd.s32 %s135, 1
      %s137 = scalar_select %p134, %s135, %s136
      %p140 = pneg %p134
      %p141 = scmp.eq.s32.totalorder %s17, 1
      %p142 = por %p140, %p141
      %p143 = scmp.ne.s32.totalorder %s135, %s138
      %p144 = scmp.eq.s32.totalorder %s17, 0
      %p145 = por %p143, %p144
      %p146 = scmp.ne.s32.totalorder %s135, %s138
      %p147 = scmp.eq.s32.totalorder %s22, 1
      %p148 = por %p146, %p147
      %p149 = scmp.ne.s32.totalorder %s138, %s139
      %p150 = scmp.eq.s32.totalorder %s22, 0
      %p151 = por %p149, %p150
      %p152 = scmp.ne.s32.totalorder %s138, %s139
      %p153 = scmp.eq.s32.totalorder %s23, 1
      %p154 = por %p152, %p153
      %p156 = scmp.ne.s32.totalorder %s139, %s155
      %p157 = scmp.eq.s32.totalorder %s23, 0
      %p158 = por %p156, %p157
      %p159 = scmp.le.s32.totalorder 1, %s17
      %p160 = scmp.lt.s32.totalorder %s17, 3
      %p161 = pnand %p159, %p160
      %p162 = pneg %p161
      // Predicated region
      $region9: #{tpu_custom_call.1} parent=5 // pred_check
        _
      $region10: #{tpu_custom_call.1} parent=5 // pred_check_branch
        %164 = sbr.rel (%p161) target = $region12
      $region11: #{tpu_custom_call.1} parent=5 // pred_region
        %s165 = ssub.s32 %s17, 1
        // Predicated region
        $region13: #{tpu_custom_call.1} parent=11 // pred_check
          %p166 = pneg %p83
        $region14: #{tpu_custom_call.1} parent=11 // pred_check_branch
          %168 = sbr.rel (%p166) target = $region16
        $region15: #{tpu_custom_call.1} parent=11 // pred_region
          %s169 = smul.u32 64, %s27
          %s171 = ssub.s32 4096, 4096
          %172 = vsyncadd [#allocation7], %s171
          %s173 = smul.addr %s169, 64
          %s174 = scalar_lea.hbm %s1, %s173
          %s175 = sshll.u32 [#allocation6], 4
          %s176 = int_to_ptr.vmem [resolvable:$true] %s175
          %181 = dma.hbm_to_vmem [thread:$0]  %s174, 4096, %s176, [#allocation7], 64, 64, 4
        $region16: #{tpu_custom_call.1} parent=11 // pred_fallthru
          _
        // Predicated region
        $region17: #{tpu_custom_call.1} parent=11 // pred_check
          %p182 = pneg %p104
        $region18: #{tpu_custom_call.1} parent=11 // pred_check_branch
          %184 = sbr.rel (%p182) target = $region20
        $region19: #{tpu_custom_call.1} parent=11 // pred_region
          %s186 = ssub.s32 1024, 1024
          %187 = vsyncadd [#allocation7], %s186
          %s188 = sshll.u32 [#allocation8], 4
          %s189 = int_to_ptr.vmem [resolvable:$true] %s188
          %194 = dma.hbm_to_vmem [thread:$0]  %s2, 1024, %s189, [#allocation7], 64, 64, 4
        $region20: #{tpu_custom_call.1} parent=11 // pred_fallthru
          _
        // Predicated region
        $region21: #{tpu_custom_call.1} parent=11 // pred_check
          %p195 = pneg %p125
        $region22: #{tpu_custom_call.1} parent=11 // pred_check_branch
          %197 = sbr.rel (%p195) target = $region24
        $region23: #{tpu_custom_call.1} parent=11 // pred_region
          _
        $region24: #{tpu_custom_call.1} parent=11 // pred_fallthru
          _
      $region12: #{tpu_custom_call.1} parent=5 // pred_fallthru
        _
      %p198 = scmp.lt.s32.totalorder %s17, 2
      // Predicated region
      $region25: #{tpu_custom_call.1} parent=5 // pred_check
        %p199 = pneg %p198
      $region26: #{tpu_custom_call.1} parent=5 // pred_check_branch
        %201 = sbr.rel (%p199) target = $region28
      $region27: #{tpu_custom_call.1} parent=5 // pred_region
        // Predicated region
        $region29: #{tpu_custom_call.1} parent=27 // pred_check
          %p202 = pneg %p51
        $region30: #{tpu_custom_call.1} parent=27 // pred_check_branch
          %204 = sbr.rel (%p202) target = $region32
        $region31: #{tpu_custom_call.1} parent=27 // pred_region
          %s205 = sand.u32 %s41, 1
          %s206 = scalar_lea.sflag [#allocation4], %s205
          %s207 = sand.u32 %s41, 1
          %s208 = smul.addr %s207, 512
          %s209 = scalar_lea.vmem [#allocation3], %s208
          %s210 = smul.u32 32, %s24
          %s211 = smul.u32 4, %s25
          %s213 = ssub.s32 8192, 8192
          %214 = vsyncadd %s206, %s213
          %s215 = smul.addr %s210, 4
          %s216 = sadd.s32 %s211, %s215
          %s217 = smul.addr %s216, 64
          %s218 = scalar_lea.hbm %s0, %s217
          %s219 = sshll.u32 %s209, 4
          %s220 = int_to_ptr.vmem [resolvable:$true] %s219
          %225 = dma.hbm_to_vmem [thread:$0]  %s218, 8192, %s220, %s206, 256, 256, 16
        $region32: #{tpu_custom_call.1} parent=27 // pred_fallthru
          _
      $region28: #{tpu_custom_call.1} parent=5 // pred_fallthru
        _
      %p226 = scmp.le.s32.totalorder 1, %s17
      %p227 = scmp.lt.s32.totalorder %s17, 3
      %p228 = pnand %p226, %p227
      %p229 = pneg %p228
      // Predicated region
      $region33: #{tpu_custom_call.1} parent=5 // pred_check
        _
      $region34: #{tpu_custom_call.1} parent=5 // pred_check_branch
        %231 = sbr.rel (%p228) target = $region36
      $region35: #{tpu_custom_call.1} parent=5 // pred_region
        %s232 = ssub.s32 %s17, 1
        %s233 = sand.u32 %s44, 1
        %s234 = scalar_lea.sflag [#allocation4], %s233
        %s235 = sand.u32 %s44, 1
        %s236 = smul.addr %s235, 512
        %s237 = scalar_lea.vmem [#allocation3], %s236
        // Predicated region
        $region37: #{tpu_custom_call.1} parent=35 // pred_check
          %p238 = pneg %p57
        $region38: #{tpu_custom_call.1} parent=35 // pred_check_branch
          %240 = sbr.rel (%p238) target = $region40
        $region39: #{tpu_custom_call.1} parent=35 // pred_region
          %241 = dma.done %s234, 8192
        $region40: #{tpu_custom_call.1} parent=35 // pred_fallthru
          _
        // Predicated region
        $region41: #{tpu_custom_call.1} parent=35 // pred_check
          %p242 = pneg %p83
        $region42: #{tpu_custom_call.1} parent=35 // pred_check_branch
          %244 = sbr.rel (%p242) target = $region44
        $region43: #{tpu_custom_call.1} parent=35 // pred_region
          %245 = dma.done [#allocation7], 4096
        $region44: #{tpu_custom_call.1} parent=35 // pred_fallthru
          _
        // Predicated region
        $region45: #{tpu_custom_call.1} parent=35 // pred_check
          %p246 = pneg %p104
        $region46: #{tpu_custom_call.1} parent=35 // pred_check_branch
          %248 = sbr.rel (%p246) target = $region48
        $region47: #{tpu_custom_call.1} parent=35 // pred_region
          %249 = dma.done [#allocation7], 1024
        $region48: #{tpu_custom_call.1} parent=35 // pred_fallthru
          _
        %s250 = sand.u32 %s44, 1
        %s251 = scalar_lea.sflag [#allocation4], %s250
        %s252 = sand.u32 %s44, 1
        %s253 = smul.addr %s252, 512
        %s254 = scalar_lea.vmem [#allocation3], %s253
        %p255 = pneg %p57
        %p256 = pneg %p54
        %p257 = pneg %p83
        %p258 = pneg %p80
        %p259 = pneg %p104
        %p260 = pneg %p101
        %p261 = pneg %p125
        %p262 = pneg %p122
        %p263 = pneg %p151
        %p264 = pneg %p148
        %s265 = sand.u32 %s138, 1
        %s266 = scalar_lea.sflag [#allocation5], %s265
        %s267 = sand.u32 %s138, 1
        %s268 = smul.addr %s267, 128
        %s269 = scalar_lea.vmem [#allocation9], %s268
        %s270 = smul.u32 32, %s26
        %s271 = smul.u32 4, %s27
        %s272 = smul.u32 64, %s27
        %s273 = smul.u32 32, %s26
        %p275 = scmp.eq.s32.totalorder %s27, 0
        // Predicated region
        $region49: #{tpu_custom_call.1} parent=35 // pred_check
          %p276 = pneg %p275
        $region50: #{tpu_custom_call.1} parent=35 // pred_check_branch
          %278 = sbr.rel (%p276) target = $region52
        $region51: #{tpu_custom_call.1} parent=35 // pred_region
          %279 = vst [vmem:[#allocation2] sm:$0xff] 0.0
          %280 = vst [vmem:[#allocation2 + $0x8] sm:$0xff] 0.0
          %281 = vst [vmem:[#allocation2 + $0x10] sm:$0xff] 0.0
          %282 = vst [vmem:[#allocation2 + $0x18] sm:$0xff] 0.0
          %283 = vst [vmem:[#allocation2 + $0x20] sm:$0xff] 0.0
          %284 = vst [vmem:[#allocation2 + $0x28] sm:$0xff] 0.0
          %285 = vst [vmem:[#allocation2 + $0x30] sm:$0xff] 0.0
          %286 = vst [vmem:[#allocation2 + $0x38] sm:$0xff] 0.0
          %287 = vst [vmem:[#allocation2 + $0x40] sm:$0xff] 0.0
          %288 = vst [vmem:[#allocation2 + $0x48] sm:$0xff] 0.0
          %289 = vst [vmem:[#allocation2 + $0x50] sm:$0xff] 0.0
          %290 = vst [vmem:[#allocation2 + $0x58] sm:$0xff] 0.0
          %291 = vst [vmem:[#allocation2 + $0x60] sm:$0xff] 0.0
          %292 = vst [vmem:[#allocation2 + $0x68] sm:$0xff] 0.0
          %293 = vst [vmem:[#allocation2 + $0x70] sm:$0xff] 0.0
          %294 = vst [vmem:[#allocation2 + $0x78] sm:$0xff] 0.0
          %295 = vst [vmem:[#allocation2 + $0x80] sm:$0xff] 0.0
          %296 = vst [vmem:[#allocation2 + $0x88] sm:$0xff] 0.0
          %297 = vst [vmem:[#allocation2 + $0x90] sm:$0xff] 0.0
          %298 = vst [vmem:[#allocation2 + $0x98] sm:$0xff] 0.0
          %299 = vst [vmem:[#allocation2 + $0xa0] sm:$0xff] 0.0
          %300 = vst [vmem:[#allocation2 + $0xa8] sm:$0xff] 0.0
          %301 = vst [vmem:[#allocation2 + $0xb0] sm:$0xff] 0.0
          %302 = vst [vmem:[#allocation2 + $0xb8] sm:$0xff] 0.0
          %303 = vst [vmem:[#allocation2 + $0xc0] sm:$0xff] 0.0
          %304 = vst [vmem:[#allocation2 + $0xc8] sm:$0xff] 0.0
          %305 = vst [vmem:[#allocation2 + $0xd0] sm:$0xff] 0.0
          %306 = vst [vmem:[#allocation2 + $0xd8] sm:$0xff] 0.0
          %307 = vst [vmem:[#allocation2 + $0xe0] sm:$0xff] 0.0
          %308 = vst [vmem:[#allocation2 + $0xe8] sm:$0xff] 0.0
          %309 = vst [vmem:[#allocation2 + $0xf0] sm:$0xff] 0.0
          %310 = vst [vmem:[#allocation2 + $0xf8] sm:$0xff] 0.0
        $region52: #{tpu_custom_call.1} parent=35 // pred_fallthru
          _
        %v311 = vld [vmem:[#allocation6] sm:$0xf]
        %v312 = vld [vmem:[#allocation6 + $0x4] sm:$0xf]
        %v313 = vld [vmem:[#allocation6 + $0x8] sm:$0xf]
        %v314 = vld [vmem:[#allocation6 + $0xc] sm:$0xf]
        %v315 = vld [vmem:[#allocation6 + $0x10] sm:$0xf]
        %v316 = vld [vmem:[#allocation6 + $0x14] sm:$0xf]
        %v317 = vld [vmem:[#allocation6 + $0x18] sm:$0xf]
        %v318 = vld [vmem:[#allocation6 + $0x1c] sm:$0xf]
        %v319 = vld [vmem:[#allocation6 + $0x20] sm:$0xf]
        %v320 = vld [vmem:[#allocation6 + $0x24] sm:$0xf]
        %v321 = vld [vmem:[#allocation6 + $0x28] sm:$0xf]
        %v322 = vld [vmem:[#allocation6 + $0x2c] sm:$0xf]
        %v323 = vld [vmem:[#allocation6 + $0x30] sm:$0xf]
        %v324 = vld [vmem:[#allocation6 + $0x34] sm:$0xf]
        %v325 = vld [vmem:[#allocation6 + $0x38] sm:$0xf]
        %v326 = vld [vmem:[#allocation6 + $0x3c] sm:$0xf]
        %v327 = vld [vmem:[#allocation6 + $0x40] sm:$0xf]
        %v328 = vld [vmem:[#allocation6 + $0x44] sm:$0xf]
        %v329 = vld [vmem:[#allocation6 + $0x48] sm:$0xf]
        %v330 = vld [vmem:[#allocation6 + $0x4c] sm:$0xf]
        %v331 = vld [vmem:[#allocation6 + $0x50] sm:$0xf]
        %v332 = vld [vmem:[#allocation6 + $0x54] sm:$0xf]
        %v333 = vld [vmem:[#allocation6 + $0x58] sm:$0xf]
        %v334 = vld [vmem:[#allocation6 + $0x5c] sm:$0xf]
        %v335 = vld [vmem:[#allocation6 + $0x60] sm:$0xf]
        %v336 = vld [vmem:[#allocation6 + $0x64] sm:$0xf]
        %v337 = vld [vmem:[#allocation6 + $0x68] sm:$0xf]
        %v338 = vld [vmem:[#allocation6 + $0x6c] sm:$0xf]
        %v339 = vld [vmem:[#allocation6 + $0x70] sm:$0xf]
        %v340 = vld [vmem:[#allocation6 + $0x74] sm:$0xf]
        %v341 = vld [vmem:[#allocation6 + $0x78] sm:$0xf]
        %v342 = vld [vmem:[#allocation6 + $0x7c] sm:$0xf]
        %v343 = vld [vmem:[#allocation6 + $0x80] sm:$0xf]
        %v344 = vld [vmem:[#allocation6 + $0x84] sm:$0xf]
        %v345 = vld [vmem:[#allocation6 + $0x88] sm:$0xf]
        %v346 = vld [vmem:[#allocation6 + $0x8c] sm:$0xf]
        %v347 = vld [vmem:[#allocation6 + $0x90] sm:$0xf]
        %v348 = vld [vmem:[#allocation6 + $0x94] sm:$0xf]
        %v349 = vld [vmem:[#allocation6 + $0x98] sm:$0xf]
        %v350 = vld [vmem:[#allocation6 + $0x9c] sm:$0xf]
        %v351 = vld [vmem:[#allocation6 + $0xa0] sm:$0xf]
        %v352 = vld [vmem:[#allocation6 + $0xa4] sm:$0xf]
        %v353 = vld [vmem:[#allocation6 + $0xa8] sm:$0xf]
        %v354 = vld [vmem:[#allocation6 + $0xac] sm:$0xf]
        %v355 = vld [vmem:[#allocation6 + $0xb0] sm:$0xf]
        %v356 = vld [vmem:[#allocation6 + $0xb4] sm:$0xf]
        %v357 = vld [vmem:[#allocation6 + $0xb8] sm:$0xf]
        %v358 = vld [vmem:[#allocation6 + $0xbc] sm:$0xf]
        %v359 = vld [vmem:[#allocation6 + $0xc0] sm:$0xf]
        %v360 = vld [vmem:[#allocation6 + $0xc4] sm:$0xf]
        %v361 = vld [vmem:[#allocation6 + $0xc8] sm:$0xf]
        %v362 = vld [vmem:[#allocation6 + $0xcc] sm:$0xf]
        %v363 = vld [vmem:[#allocation6 + $0xd0] sm:$0xf]
        %v364 = vld [vmem:[#allocation6 + $0xd4] sm:$0xf]
        %v365 = vld [vmem:[#allocation6 + $0xd8] sm:$0xf]
        %v366 = vld [vmem:[#allocation6 + $0xdc] sm:$0xf]
        %v367 = vld [vmem:[#allocation6 + $0xe0] sm:$0xf]
        %v368 = vld [vmem:[#allocation6 + $0xe4] sm:$0xf]
        %v369 = vld [vmem:[#allocation6 + $0xe8] sm:$0xf]
        %v370 = vld [vmem:[#allocation6 + $0xec] sm:$0xf]
        %v371 = vld [vmem:[#allocation6 + $0xf0] sm:$0xf]
        %v372 = vld [vmem:[#allocation6 + $0xf4] sm:$0xf]
        %v373 = vld [vmem:[#allocation6 + $0xf8] sm:$0xf]
        %v374 = vld [vmem:[#allocation6 + $0xfc] sm:$0xf]
        %v375 = vld [vmem:[#allocation8] sm:$0xf]
        %v376 = vld [vmem:[#allocation8 + $0x4] sm:$0xf]
        %v377 = vld [vmem:[#allocation8 + $0x8] sm:$0xf]
        %v378 = vld [vmem:[#allocation8 + $0xc] sm:$0xf]
        %v379 = vld [vmem:[#allocation8 + $0x10] sm:$0xf]
        %v380 = vld [vmem:[#allocation8 + $0x14] sm:$0xf]
        %v381 = vld [vmem:[#allocation8 + $0x18] sm:$0xf]
        %v382 = vld [vmem:[#allocation8 + $0x1c] sm:$0xf]
        %v383 = vld [vmem:[#allocation8 + $0x20] sm:$0xf]
        %v384 = vld [vmem:[#allocation8 + $0x24] sm:$0xf]
        %v385 = vld [vmem:[#allocation8 + $0x28] sm:$0xf]
        %v386 = vld [vmem:[#allocation8 + $0x2c] sm:$0xf]
        %v387 = vld [vmem:[#allocation8 + $0x30] sm:$0xf]
        %v388 = vld [vmem:[#allocation8 + $0x34] sm:$0xf]
        %v389 = vld [vmem:[#allocation8 + $0x38] sm:$0xf]
        %v390 = vld [vmem:[#allocation8 + $0x3c] sm:$0xf]
        %v455 = vunpack.c.l.b16 %v311
        %v456 = vunpack.c.l.b16 %v312
        %v457 = vunpack.c.l.b16 %v313
        %v458 = vunpack.c.l.b16 %v314
        %v459 = vunpack.c.l.b16 %v315
        %v460 = vunpack.c.l.b16 %v316
        %v461 = vunpack.c.l.b16 %v317
        %v462 = vunpack.c.l.b16 %v318
        %v463 = vunpack.c.l.b16 %v319
        %v464 = vunpack.c.l.b16 %v320
        %v465 = vunpack.c.l.b16 %v321
        %v466 = vunpack.c.l.b16 %v322
        %v467 = vunpack.c.l.b16 %v323
        %v468 = vunpack.c.l.b16 %v324
        %v469 = vunpack.c.l.b16 %v325
        %v470 = vunpack.c.l.b16 %v326
        %v471 = vunpack.c.l.b16 %v327
        %v472 = vunpack.c.l.b16 %v328
        %v473 = vunpack.c.l.b16 %v329
        %v474 = vunpack.c.l.b16 %v330
        %v475 = vunpack.c.l.b16 %v331
        %v476 = vunpack.c.l.b16 %v332
        %v477 = vunpack.c.l.b16 %v333
        %v478 = vunpack.c.l.b16 %v334
        %v479 = vunpack.c.l.b16 %v335
        %v480 = vunpack.c.l.b16 %v336
        %v481 = vunpack.c.l.b16 %v337
        %v482 = vunpack.c.l.b16 %v338
        %v483 = vunpack.c.l.b16 %v339
        %v484 = vunpack.c.l.b16 %v340
        %v485 = vunpack.c.l.b16 %v341
        %v486 = vunpack.c.l.b16 %v342
        %v487 = vunpack.c.l.b16 %v343
        %v488 = vunpack.c.l.b16 %v344
        %v489 = vunpack.c.l.b16 %v345
        %v490 = vunpack.c.l.b16 %v346
        %v491 = vunpack.c.l.b16 %v347
        %v492 = vunpack.c.l.b16 %v348
        %v493 = vunpack.c.l.b16 %v349
        %v494 = vunpack.c.l.b16 %v350
        %v495 = vunpack.c.l.b16 %v351
        %v496 = vunpack.c.l.b16 %v352
        %v497 = vunpack.c.l.b16 %v353
        %v498 = vunpack.c.l.b16 %v354
        %v499 = vunpack.c.l.b16 %v355
        %v500 = vunpack.c.l.b16 %v356
        %v501 = vunpack.c.l.b16 %v357
        %v502 = vunpack.c.l.b16 %v358
        %v503 = vunpack.c.l.b16 %v359
        %v504 = vunpack.c.l.b16 %v360
        %v505 = vunpack.c.l.b16 %v361
        %v506 = vunpack.c.l.b16 %v362
        %v507 = vunpack.c.l.b16 %v363
        %v508 = vunpack.c.l.b16 %v364
        %v509 = vunpack.c.l.b16 %v365
        %v510 = vunpack.c.l.b16 %v366
        %v511 = vunpack.c.l.b16 %v367
        %v512 = vunpack.c.l.b16 %v368
        %v513 = vunpack.c.l.b16 %v369
        %v514 = vunpack.c.l.b16 %v370
        %v515 = vunpack.c.l.b16 %v371
        %v516 = vunpack.c.l.b16 %v372
        %v517 = vunpack.c.l.b16 %v373
        %v518 = vunpack.c.l.b16 %v374
        %v519 = vpack.c.b16 %v456, %v455
        %v520 = vpack.c.b16 %v458, %v457
        %v521 = vpack.c.b16 %v460, %v459
        %v522 = vpack.c.b16 %v462, %v461
        %v523 = vpack.c.b16 %v464, %v463
        %v524 = vpack.c.b16 %v466, %v465
        %v525 = vpack.c.b16 %v468, %v467
        %v526 = vpack.c.b16 %v470, %v469
        %v527 = vpack.c.b16 %v472, %v471
        %v528 = vpack.c.b16 %v474, %v473
        %v529 = vpack.c.b16 %v476, %v475
        %v530 = vpack.c.b16 %v478, %v477
        %v531 = vpack.c.b16 %v480, %v479
        %v532 = vpack.c.b16 %v482, %v481
        %v533 = vpack.c.b16 %v484, %v483
        %v534 = vpack.c.b16 %v486, %v485
        %v535 = vpack.c.b16 %v488, %v487
        %v536 = vpack.c.b16 %v490, %v489
        %v537 = vpack.c.b16 %v492, %v491
        %v538 = vpack.c.b16 %v494, %v493
        %v539 = vpack.c.b16 %v496, %v495
        %v540 = vpack.c.b16 %v498, %v497
        %v541 = vpack.c.b16 %v500, %v499
        %v542 = vpack.c.b16 %v502, %v501
        %v543 = vpack.c.b16 %v504, %v503
        %v544 = vpack.c.b16 %v506, %v505
        %v545 = vpack.c.b16 %v508, %v507
        %v546 = vpack.c.b16 %v510, %v509
        %v547 = vpack.c.b16 %v512, %v511
        %v548 = vpack.c.b16 %v514, %v513
        %v549 = vpack.c.b16 %v516, %v515
        %v550 = vpack.c.b16 %v518, %v517
        %v599 = vunpack.c.l.b16 %v375
        %v600 = vunpack.c.l.b16 %v376
        %v601 = vunpack.c.l.b16 %v377
        %v602 = vunpack.c.l.b16 %v378
        %v603 = vunpack.c.l.b16 %v379
        %v604 = vunpack.c.l.b16 %v380
        %v605 = vunpack.c.l.b16 %v381
        %v606 = vunpack.c.l.b16 %v382
        %v607 = vunpack.c.l.b16 %v383
        %v608 = vunpack.c.l.b16 %v384
        %v609 = vunpack.c.l.b16 %v385
        %v610 = vunpack.c.l.b16 %v386
        %v611 = vunpack.c.l.b16 %v387
        %v612 = vunpack.c.l.b16 %v388
        %v613 = vunpack.c.l.b16 %v389
        %v614 = vunpack.c.l.b16 %v390
        %v615 = vpack.c.b16 %v600, %v599
        %v616 = vpack.c.b16 %v602, %v601
        %v617 = vpack.c.b16 %v604, %v603
        %v618 = vpack.c.b16 %v606, %v605
        %v619 = vpack.c.b16 %v608, %v607
        %v620 = vpack.c.b16 %v610, %v609
        %v621 = vpack.c.b16 %v612, %v611
        %v622 = vpack.c.b16 %v614, %v613
        %631 = vmatprep.subr.bf16.mxu0 0
        %632 = vmatpush1.bf16.msra.mxu0 %v622
        %633 = vmatprep.subr.bf16.mxu0 0
        %634 = vmatpush1.bf16.msra.mxu0 %v621
        %635 = vmatprep.subr.bf16.mxu0 0
        %636 = vmatpush1.bf16.msra.mxu0 %v620
        %637 = vmatprep.subr.bf16.mxu0 0
        %638 = vmatpush1.bf16.msra.mxu0 %v619
        %639 = vmatprep.subr.bf16.mxu0 0
        %640 = vmatpush1.bf16.msra.mxu0 %v618
        %641 = vmatprep.subr.bf16.mxu0 0
        %642 = vmatpush1.bf16.msra.mxu0 %v617
        %643 = vmatprep.subr.bf16.mxu0 0
        %644 = vmatpush1.bf16.msra.mxu0 %v616
        %645 = vmatprep.subr.bf16.mxu0 0
        %646 = vmatpush1.bf16.msra.mxu0 %v615
        %647 = vmatprep.subr.bf16.mxu0 0
        %648 = vmatpush2.bf16.msra.mxu0 0
        %649 = vmatprep.subr.bf16.mxu0 0
        %650 = vmatpush2.bf16.msra.mxu0 0
        %651 = vmatprep.subr.bf16.mxu0 0
        %652 = vmatpush2.bf16.msra.mxu0 0
        %653 = vmatprep.subr.bf16.mxu0 0
        %654 = vmatpush2.bf16.msra.mxu0 0
        %655 = vmatprep.subr.bf16.mxu0 0
        %656 = vmatpush2.bf16.msra.mxu0 0
        %657 = vmatprep.subr.bf16.mxu0 0
        %658 = vmatpush2.bf16.msra.mxu0 0
        %659 = vmatprep.subr.bf16.mxu0 0
        %660 = vmatpush2.bf16.msra.mxu0 0
        %661 = vmatprep.subr.bf16.mxu0 0
        %662 = vmatpush2.bf16.msra.mxu0 0
        %663 = vmatprep.mubr.bf16.mxu0 0
        %664 = vmatmul.mubr.bf16.gmra.mxu0 %v519
        %v665 = vpop.f32.mrf.mxu0
        %v666 = vadd.f32 0.0, %v665
        %v667 = vpop.f32.mrf.mxu0
        %v668 = vpop.f32.mrf.mxu0
        %v669 = vadd.f32 0.0, %v668
        %v670 = vpop.f32.mrf.mxu0
        %671 = vmatprep.mubr.bf16.mxu0 0
        %672 = vmatmul.mubr.bf16.gmra.mxu0 %v520
        %v673 = vpop.f32.mrf.mxu0
        %v674 = vadd.f32 0.0, %v673
        %v675 = vpop.f32.mrf.mxu0
        %v676 = vpop.f32.mrf.mxu0
        %v677 = vadd.f32 0.0, %v676
        %v678 = vpop.f32.mrf.mxu0
        %679 = vmatprep.mubr.bf16.mxu0 0
        %680 = vmatmul.mubr.bf16.gmra.mxu0 %v521
        %v681 = vpop.f32.mrf.mxu0
        %v682 = vadd.f32 0.0, %v681
        %v683 = vpop.f32.mrf.mxu0
        %v684 = vpop.f32.mrf.mxu0
        %v685 = vadd.f32 0.0, %v684
        %v686 = vpop.f32.mrf.mxu0
        %687 = vmatprep.mubr.bf16.mxu0 0
        %688 = vmatmul.mubr.bf16.gmra.mxu0 %v522
        %v689 = vpop.f32.mrf.mxu0
        %v690 = vadd.f32 0.0, %v689
        %v691 = vpop.f32.mrf.mxu0
        %v692 = vpop.f32.mrf.mxu0
        %v693 = vadd.f32 0.0, %v692
        %v694 = vpop.f32.mrf.mxu0
        %695 = vmatprep.mubr.bf16.mxu0 0
        %696 = vmatmul.mubr.bf16.gmra.mxu0 %v523
        %v697 = vpop.f32.mrf.mxu0
        %v698 = vadd.f32 0.0, %v697
        %v699 = vpop.f32.mrf.mxu0
        %v700 = vpop.f32.mrf.mxu0
        %v701 = vadd.f32 0.0, %v700
        %v702 = vpop.f32.mrf.mxu0
        %703 = vmatprep.mubr.bf16.mxu0 0
        %704 = vmatmul.mubr.bf16.gmra.mxu0 %v524
        %v705 = vpop.f32.mrf.mxu0
        %v706 = vadd.f32 0.0, %v705
        %v707 = vpop.f32.mrf.mxu0
        %v708 = vpop.f32.mrf.mxu0
        %v709 = vadd.f32 0.0, %v708
        %v710 = vpop.f32.mrf.mxu0
        %711 = vmatprep.mubr.bf16.mxu0 0
        %712 = vmatmul.mubr.bf16.gmra.mxu0 %v525
        %v713 = vpop.f32.mrf.mxu0
        %v714 = vadd.f32 0.0, %v713
        %v715 = vpop.f32.mrf.mxu0
        %v716 = vpop.f32.mrf.mxu0
        %v717 = vadd.f32 0.0, %v716
        %v718 = vpop.f32.mrf.mxu0
        %719 = vmatprep.mubr.bf16.mxu0 0
        %720 = vmatmul.mubr.bf16.gmra.mxu0 %v526
        %v721 = vpop.f32.mrf.mxu0
        %v722 = vadd.f32 0.0, %v721
        %v723 = vpop.f32.mrf.mxu0
        %v724 = vpop.f32.mrf.mxu0
        %v725 = vadd.f32 0.0, %v724
        %v726 = vpop.f32.mrf.mxu0
        %727 = vmatprep.mubr.bf16.mxu0 0
        %728 = vmatmul.mubr.bf16.gmra.mxu0 %v527
        %v729 = vpop.f32.mrf.mxu0
        %v730 = vadd.f32 0.0, %v729
        %v731 = vpop.f32.mrf.mxu0
        %v732 = vpop.f32.mrf.mxu0
        %v733 = vadd.f32 0.0, %v732
        %v734 = vpop.f32.mrf.mxu0
        %735 = vmatprep.mubr.bf16.mxu0 0
        %736 = vmatmul.mubr.bf16.gmra.mxu0 %v528
        %v737 = vpop.f32.mrf.mxu0
        %v738 = vadd.f32 0.0, %v737
        %v739 = vpop.f32.mrf.mxu0
        %v740 = vpop.f32.mrf.mxu0
        %v741 = vadd.f32 0.0, %v740
        %v742 = vpop.f32.mrf.mxu0
        %743 = vmatprep.mubr.bf16.mxu0 0
        %744 = vmatmul.mubr.bf16.gmra.mxu0 %v529
        %v745 = vpop.f32.mrf.mxu0
        %v746 = vadd.f32 0.0, %v745
        %v747 = vpop.f32.mrf.mxu0
        %v748 = vpop.f32.mrf.mxu0
        %v749 = vadd.f32 0.0, %v748
        %v750 = vpop.f32.mrf.mxu0
        %751 = vmatprep.mubr.bf16.mxu0 0
        %752 = vmatmul.mubr.bf16.gmra.mxu0 %v530
        %v753 = vpop.f32.mrf.mxu0
        %v754 = vadd.f32 0.0, %v753
        %v755 = vpop.f32.mrf.mxu0
        %v756 = vpop.f32.mrf.mxu0
        %v757 = vadd.f32 0.0, %v756
        %v758 = vpop.f32.mrf.mxu0
        %759 = vmatprep.mubr.bf16.mxu0 0
        %760 = vmatmul.mubr.bf16.gmra.mxu0 %v531
        %v761 = vpop.f32.mrf.mxu0
        %v762 = vadd.f32 0.0, %v761
        %v763 = vpop.f32.mrf.mxu0
        %v764 = vpop.f32.mrf.mxu0
        %v765 = vadd.f32 0.0, %v764
        %v766 = vpop.f32.mrf.mxu0
        %767 = vmatprep.mubr.bf16.mxu0 0
        %768 = vmatmul.mubr.bf16.gmra.mxu0 %v532
        %v769 = vpop.f32.mrf.mxu0
        %v770 = vadd.f32 0.0, %v769
        %v771 = vpop.f32.mrf.mxu0
        %v772 = vpop.f32.mrf.mxu0
        %v773 = vadd.f32 0.0, %v772
        %v774 = vpop.f32.mrf.mxu0
        %775 = vmatprep.mubr.bf16.mxu0 0
        %776 = vmatmul.mubr.bf16.gmra.mxu0 %v533
        %v777 = vpop.f32.mrf.mxu0
        %v778 = vadd.f32 0.0, %v777
        %v779 = vpop.f32.mrf.mxu0
        %v780 = vpop.f32.mrf.mxu0
        %v781 = vadd.f32 0.0, %v780
        %v782 = vpop.f32.mrf.mxu0
        %783 = vmatprep.mubr.bf16.mxu0 0
        %784 = vmatmul.mubr.bf16.gmra.mxu0 %v534
        %v785 = vpop.f32.mrf.mxu0
        %v786 = vadd.f32 0.0, %v785
        %v787 = vpop.f32.mrf.mxu0
        %v788 = vpop.f32.mrf.mxu0
        %v789 = vadd.f32 0.0, %v788
        %v790 = vpop.f32.mrf.mxu0
        %791 = vmatprep.mubr.bf16.mxu0 0
        %792 = vmatmul.mubr.bf16.gmra.mxu0 %v535
        %v793 = vpop.f32.mrf.mxu0
        %v794 = vadd.f32 0.0, %v793
        %v795 = vpop.f32.mrf.mxu0
        %v796 = vpop.f32.mrf.mxu0
        %v797 = vadd.f32 0.0, %v796
        %v798 = vpop.f32.mrf.mxu0
        %799 = vmatprep.mubr.bf16.mxu0 0
        %800 = vmatmul.mubr.bf16.gmra.mxu0 %v536
        %v801 = vpop.f32.mrf.mxu0
        %v802 = vadd.f32 0.0, %v801
        %v803 = vpop.f32.mrf.mxu0
        %v804 = vpop.f32.mrf.mxu0
        %v805 = vadd.f32 0.0, %v804
        %v806 = vpop.f32.mrf.mxu0
        %807 = vmatprep.mubr.bf16.mxu0 0
        %808 = vmatmul.mubr.bf16.gmra.mxu0 %v537
        %v809 = vpop.f32.mrf.mxu0
        %v810 = vadd.f32 0.0, %v809
        %v811 = vpop.f32.mrf.mxu0
        %v812 = vpop.f32.mrf.mxu0
        %v813 = vadd.f32 0.0, %v812
        %v814 = vpop.f32.mrf.mxu0
        %815 = vmatprep.mubr.bf16.mxu0 0
        %816 = vmatmul.mubr.bf16.gmra.mxu0 %v538
        %v817 = vpop.f32.mrf.mxu0
        %v818 = vadd.f32 0.0, %v817
        %v819 = vpop.f32.mrf.mxu0
        %v820 = vpop.f32.mrf.mxu0
        %v821 = vadd.f32 0.0, %v820
        %v822 = vpop.f32.mrf.mxu0
        %823 = vmatprep.mubr.bf16.mxu0 0
        %824 = vmatmul.mubr.bf16.gmra.mxu0 %v539
        %v825 = vpop.f32.mrf.mxu0
        %v826 = vadd.f32 0.0, %v825
        %v827 = vpop.f32.mrf.mxu0
        %v828 = vpop.f32.mrf.mxu0
        %v829 = vadd.f32 0.0, %v828
        %v830 = vpop.f32.mrf.mxu0
        %831 = vmatprep.mubr.bf16.mxu0 0
        %832 = vmatmul.mubr.bf16.gmra.mxu0 %v540
        %v833 = vpop.f32.mrf.mxu0
        %v834 = vadd.f32 0.0, %v833
        %v835 = vpop.f32.mrf.mxu0
        %v836 = vpop.f32.mrf.mxu0
        %v837 = vadd.f32 0.0, %v836
        %v838 = vpop.f32.mrf.mxu0
        %839 = vmatprep.mubr.bf16.mxu0 0
        %840 = vmatmul.mubr.bf16.gmra.mxu0 %v541
        %v841 = vpop.f32.mrf.mxu0
        %v842 = vadd.f32 0.0, %v841
        %v843 = vpop.f32.mrf.mxu0
        %v844 = vpop.f32.mrf.mxu0
        %v845 = vadd.f32 0.0, %v844
        %v846 = vpop.f32.mrf.mxu0
        %847 = vmatprep.mubr.bf16.mxu0 0
        %848 = vmatmul.mubr.bf16.gmra.mxu0 %v542
        %v849 = vpop.f32.mrf.mxu0
        %v850 = vadd.f32 0.0, %v849
        %v851 = vpop.f32.mrf.mxu0
        %v852 = vpop.f32.mrf.mxu0
        %v853 = vadd.f32 0.0, %v852
        %v854 = vpop.f32.mrf.mxu0
        %855 = vmatprep.mubr.bf16.mxu0 0
        %856 = vmatmul.mubr.bf16.gmra.mxu0 %v543
        %v857 = vpop.f32.mrf.mxu0
        %v858 = vadd.f32 0.0, %v857
        %v859 = vpop.f32.mrf.mxu0
        %v860 = vpop.f32.mrf.mxu0
        %v861 = vadd.f32 0.0, %v860
        %v862 = vpop.f32.mrf.mxu0
        %863 = vmatprep.mubr.bf16.mxu0 0
        %864 = vmatmul.mubr.bf16.gmra.mxu0 %v544
        %v865 = vpop.f32.mrf.mxu0
        %v866 = vadd.f32 0.0, %v865
        %v867 = vpop.f32.mrf.mxu0
        %v868 = vpop.f32.mrf.mxu0
        %v869 = vadd.f32 0.0, %v868
        %v870 = vpop.f32.mrf.mxu0
        %871 = vmatprep.mubr.bf16.mxu0 0
        %872 = vmatmul.mubr.bf16.gmra.mxu0 %v545
        %v873 = vpop.f32.mrf.mxu0
        %v874 = vadd.f32 0.0, %v873
        %v875 = vpop.f32.mrf.mxu0
        %v876 = vpop.f32.mrf.mxu0
        %v877 = vadd.f32 0.0, %v876
        %v878 = vpop.f32.mrf.mxu0
        %879 = vmatprep.mubr.bf16.mxu0 0
        %880 = vmatmul.mubr.bf16.gmra.mxu0 %v546
        %v881 = vpop.f32.mrf.mxu0
        %v882 = vadd.f32 0.0, %v881
        %v883 = vpop.f32.mrf.mxu0
        %v884 = vpop.f32.mrf.mxu0
        %v885 = vadd.f32 0.0, %v884
        %v886 = vpop.f32.mrf.mxu0
        %887 = vmatprep.mubr.bf16.mxu0 0
        %888 = vmatmul.mubr.bf16.gmra.mxu0 %v547
        %v889 = vpop.f32.mrf.mxu0
        %v890 = vadd.f32 0.0, %v889
        %v891 = vpop.f32.mrf.mxu0
        %v892 = vpop.f32.mrf.mxu0
        %v893 = vadd.f32 0.0, %v892
        %v894 = vpop.f32.mrf.mxu0
        %895 = vmatprep.mubr.bf16.mxu0 0
        %896 = vmatmul.mubr.bf16.gmra.mxu0 %v548
        %v897 = vpop.f32.mrf.mxu0
        %v898 = vadd.f32 0.0, %v897
        %v899 = vpop.f32.mrf.mxu0
        %v900 = vpop.f32.mrf.mxu0
        %v901 = vadd.f32 0.0, %v900
        %v902 = vpop.f32.mrf.mxu0
        %903 = vmatprep.mubr.bf16.mxu0 0
        %904 = vmatmul.mubr.bf16.gmra.mxu0 %v549
        %v905 = vpop.f32.mrf.mxu0
        %v906 = vadd.f32 0.0, %v905
        %v907 = vpop.f32.mrf.mxu0
        %v908 = vpop.f32.mrf.mxu0
        %v909 = vadd.f32 0.0, %v908
        %v910 = vpop.f32.mrf.mxu0
        %911 = vmatprep.mubr.bf16.mxu0 0
        %912 = vmatmul.mubr.bf16.gmra.mxu0 %v550
        %v913 = vpop.f32.mrf.mxu0
        %v914 = vadd.f32 0.0, %v913
        %v915 = vpop.f32.mrf.mxu0
        %v916 = vpop.f32.mrf.mxu0
        %v917 = vadd.f32 0.0, %v916
        %v918 = vpop.f32.mrf.mxu0
        %919 = vdwg.mxu0
        %v920 = vld [vmem:[#allocation2] sm:$0xff]
        %v921 = vld [vmem:[#allocation2 + $0x8] sm:$0xff]
        %v922 = vld [vmem:[#allocation2 + $0x10] sm:$0xff]
        %v923 = vld [vmem:[#allocation2 + $0x18] sm:$0xff]
        %v924 = vld [vmem:[#allocation2 + $0x20] sm:$0xff]
        %v925 = vld [vmem:[#allocation2 + $0x28] sm:$0xff]
        %v926 = vld [vmem:[#allocation2 + $0x30] sm:$0xff]
        %v927 = vld [vmem:[#allocation2 + $0x38] sm:$0xff]
        %v928 = vld [vmem:[#allocation2 + $0x40] sm:$0xff]
        %v929 = vld [vmem:[#allocation2 + $0x48] sm:$0xff]
        %v930 = vld [vmem:[#allocation2 + $0x50] sm:$0xff]
        %v931 = vld [vmem:[#allocation2 + $0x58] sm:$0xff]
        %v932 = vld [vmem:[#allocation2 + $0x60] sm:$0xff]
        %v933 = vld [vmem:[#allocation2 + $0x68] sm:$0xff]
        %v934 = vld [vmem:[#allocation2 + $0x70] sm:$0xff]
        %v935 = vld [vmem:[#allocation2 + $0x78] sm:$0xff]
        %v936 = vld [vmem:[#allocation2 + $0x80] sm:$0xff]
        %v937 = vld [vmem:[#allocation2 + $0x88] sm:$0xff]
        %v938 = vld [vmem:[#allocation2 + $0x90] sm:$0xff]
        %v939 = vld [vmem:[#allocation2 + $0x98] sm:$0xff]
        %v940 = vld [vmem:[#allocation2 + $0xa0] sm:$0xff]
        %v941 = vld [vmem:[#allocation2 + $0xa8] sm:$0xff]
        %v942 = vld [vmem:[#allocation2 + $0xb0] sm:$0xff]
        %v943 = vld [vmem:[#allocation2 + $0xb8] sm:$0xff]
        %v944 = vld [vmem:[#allocation2 + $0xc0] sm:$0xff]
        %v945 = vld [vmem:[#allocation2 + $0xc8] sm:$0xff]
        %v946 = vld [vmem:[#allocation2 + $0xd0] sm:$0xff]
        %v947 = vld [vmem:[#allocation2 + $0xd8] sm:$0xff]
        %v948 = vld [vmem:[#allocation2 + $0xe0] sm:$0xff]
        %v949 = vld [vmem:[#allocation2 + $0xe8] sm:$0xff]
        %v950 = vld [vmem:[#allocation2 + $0xf0] sm:$0xff]
        %v951 = vld [vmem:[#allocation2 + $0xf8] sm:$0xff]
        %v952 = vld [vmem:[%s237] sm:$0xff]
        %v953 = vld [vmem:[%s237 + $0x8] sm:$0xff]
        %v954 = vld [vmem:[%s237 + $0x10] sm:$0xff]
        %v955 = vld [vmem:[%s237 + $0x18] sm:$0xff]
        %v956 = vld [vmem:[%s237 + $0x20] sm:$0xff]
        %v957 = vld [vmem:[%s237 + $0x28] sm:$0xff]
        %v958 = vld [vmem:[%s237 + $0x30] sm:$0xff]
        %v959 = vld [vmem:[%s237 + $0x38] sm:$0xff]
        %v960 = vld [vmem:[%s237 + $0x40] sm:$0xff]
        %v961 = vld [vmem:[%s237 + $0x48] sm:$0xff]
        %v962 = vld [vmem:[%s237 + $0x50] sm:$0xff]
        %v963 = vld [vmem:[%s237 + $0x58] sm:$0xff]
        %v964 = vld [vmem:[%s237 + $0x60] sm:$0xff]
        %v965 = vld [vmem:[%s237 + $0x68] sm:$0xff]
        %v966 = vld [vmem:[%s237 + $0x70] sm:$0xff]
        %v967 = vld [vmem:[%s237 + $0x78] sm:$0xff]
        %v968 = vld [vmem:[%s237 + $0x80] sm:$0xff]
        %v969 = vld [vmem:[%s237 + $0x88] sm:$0xff]
        %v970 = vld [vmem:[%s237 + $0x90] sm:$0xff]
        %v971 = vld [vmem:[%s237 + $0x98] sm:$0xff]
        %v972 = vld [vmem:[%s237 + $0xa0] sm:$0xff]
        %v973 = vld [vmem:[%s237 + $0xa8] sm:$0xff]
        %v974 = vld [vmem:[%s237 + $0xb0] sm:$0xff]
        %v975 = vld [vmem:[%s237 + $0xb8] sm:$0xff]
        %v976 = vld [vmem:[%s237 + $0xc0] sm:$0xff]
        %v977 = vld [vmem:[%s237 + $0xc8] sm:$0xff]
        %v978 = vld [vmem:[%s237 + $0xd0] sm:$0xff]
        %v979 = vld [vmem:[%s237 + $0xd8] sm:$0xff]
        %v980 = vld [vmem:[%s237 + $0xe0] sm:$0xff]
        %v981 = vld [vmem:[%s237 + $0xe8] sm:$0xff]
        %v982 = vld [vmem:[%s237 + $0xf0] sm:$0xff]
        %v983 = vld [vmem:[%s237 + $0xf8] sm:$0xff]
        %v984 = vld [vmem:[%s237 + $0x100] sm:$0xff]
        %v985 = vld [vmem:[%s237 + $0x108] sm:$0xff]
        %v986 = vld [vmem:[%s237 + $0x110] sm:$0xff]
        %v987 = vld [vmem:[%s237 + $0x118] sm:$0xff]
        %v988 = vld [vmem:[%s237 + $0x120] sm:$0xff]
        %v989 = vld [vmem:[%s237 + $0x128] sm:$0xff]
        %v990 = vld [vmem:[%s237 + $0x130] sm:$0xff]
        %v991 = vld [vmem:[%s237 + $0x138] sm:$0xff]
        %v992 = vld [vmem:[%s237 + $0x140] sm:$0xff]
        %v993 = vld [vmem:[%s237 + $0x148] sm:$0xff]
        %v994 = vld [vmem:[%s237 + $0x150] sm:$0xff]
        %v995 = vld [vmem:[%s237 + $0x158] sm:$0xff]
        %v996 = vld [vmem:[%s237 + $0x160] sm:$0xff]
        %v997 = vld [vmem:[%s237 + $0x168] sm:$0xff]
        %v998 = vld [vmem:[%s237 + $0x170] sm:$0xff]
        %v999 = vld [vmem:[%s237 + $0x178] sm:$0xff]
        %v1000 = vld [vmem:[%s237 + $0x180] sm:$0xff]
        %v1001 = vld [vmem:[%s237 + $0x188] sm:$0xff]
        %v1002 = vld [vmem:[%s237 + $0x190] sm:$0xff]
        %v1003 = vld [vmem:[%s237 + $0x198] sm:$0xff]
        %v1004 = vld [vmem:[%s237 + $0x1a0] sm:$0xff]
        %v1005 = vld [vmem:[%s237 + $0x1a8] sm:$0xff]
        %v1006 = vld [vmem:[%s237 + $0x1b0] sm:$0xff]
        %v1007 = vld [vmem:[%s237 + $0x1b8] sm:$0xff]
        %v1008 = vld [vmem:[%s237 + $0x1c0] sm:$0xff]
        %v1009 = vld [vmem:[%s237 + $0x1c8] sm:$0xff]
        %v1010 = vld [vmem:[%s237 + $0x1d0] sm:$0xff]
        %v1011 = vld [vmem:[%s237 + $0x1d8] sm:$0xff]
        %v1012 = vld [vmem:[%s237 + $0x1e0] sm:$0xff]
        %v1013 = vld [vmem:[%s237 + $0x1e8] sm:$0xff]
        %v1014 = vld [vmem:[%s237 + $0x1f0] sm:$0xff]
        %v1015 = vld [vmem:[%s237 + $0x1f8] sm:$0xff]
        %v1016 = vpack.c.bf16 %v669, %v666
        %v1017 = vpack.c.bf16 %v677, %v674
        %v1018 = vpack.c.bf16 %v685, %v682
        %v1019 = vpack.c.bf16 %v693, %v690
        %v1020 = vpack.c.bf16 %v701, %v698
        %v1021 = vpack.c.bf16 %v709, %v706
        %v1022 = vpack.c.bf16 %v717, %v714
        %v1023 = vpack.c.bf16 %v725, %v722
        %v1024 = vpack.c.bf16 %v733, %v730
        %v1025 = vpack.c.bf16 %v741, %v738
        %v1026 = vpack.c.bf16 %v749, %v746
        %v1027 = vpack.c.bf16 %v757, %v754
        %v1028 = vpack.c.bf16 %v765, %v762
        %v1029 = vpack.c.bf16 %v773, %v770
        %v1030 = vpack.c.bf16 %v781, %v778
        %v1031 = vpack.c.bf16 %v789, %v786
        %v1032 = vpack.c.bf16 %v797, %v794
        %v1033 = vpack.c.bf16 %v805, %v802
        %v1034 = vpack.c.bf16 %v813, %v810
        %v1035 = vpack.c.bf16 %v821, %v818
        %v1036 = vpack.c.bf16 %v829, %v826
        %v1037 = vpack.c.bf16 %v837, %v834
        %v1038 = vpack.c.bf16 %v845, %v842
        %v1039 = vpack.c.bf16 %v853, %v850
        %v1040 = vpack.c.bf16 %v861, %v858
        %v1041 = vpack.c.bf16 %v869, %v866
        %v1042 = vpack.c.bf16 %v877, %v874
        %v1043 = vpack.c.bf16 %v885, %v882
        %v1044 = vpack.c.bf16 %v893, %v890
        %v1045 = vpack.c.bf16 %v901, %v898
        %v1046 = vpack.c.bf16 %v909, %v906
        %v1047 = vpack.c.bf16 %v917, %v914
        %v1112 = vunpack.c.l.b16 %v952
        %v1113 = vunpack.c.h.b16 %v952
        %v1114 = vunpack.c.l.b16 %v953
        %v1115 = vunpack.c.h.b16 %v953
        %v1116 = vunpack.c.l.b16 %v954
        %v1117 = vunpack.c.h.b16 %v954
        %v1118 = vunpack.c.l.b16 %v955
        %v1119 = vunpack.c.h.b16 %v955
        %v1120 = vunpack.c.l.b16 %v956
        %v1121 = vunpack.c.h.b16 %v956
        %v1122 = vunpack.c.l.b16 %v957
        %v1123 = vunpack.c.h.b16 %v957
        %v1124 = vunpack.c.l.b16 %v958
        %v1125 = vunpack.c.h.b16 %v958
        %v1126 = vunpack.c.l.b16 %v959
        %v1127 = vunpack.c.h.b16 %v959
        %v1128 = vunpack.c.l.b16 %v960
        %v1129 = vunpack.c.h.b16 %v960
        %v1130 = vunpack.c.l.b16 %v961
        %v1131 = vunpack.c.h.b16 %v961
        %v1132 = vunpack.c.l.b16 %v962
        %v1133 = vunpack.c.h.b16 %v962
        %v1134 = vunpack.c.l.b16 %v963
        %v1135 = vunpack.c.h.b16 %v963
        %v1136 = vunpack.c.l.b16 %v964
        %v1137 = vunpack.c.h.b16 %v964
        %v1138 = vunpack.c.l.b16 %v965
        %v1139 = vunpack.c.h.b16 %v965
        %v1140 = vunpack.c.l.b16 %v966
        %v1141 = vunpack.c.h.b16 %v966
        %v1142 = vunpack.c.l.b16 %v967
        %v1143 = vunpack.c.h.b16 %v967
        %v1144 = vunpack.c.l.b16 %v968
        %v1145 = vunpack.c.h.b16 %v968
        %v1146 = vunpack.c.l.b16 %v969
        %v1147 = vunpack.c.h.b16 %v969
        %v1148 = vunpack.c.l.b16 %v970
        %v1149 = vunpack.c.h.b16 %v970
        %v1150 = vunpack.c.l.b16 %v971
        %v1151 = vunpack.c.h.b16 %v971
        %v1152 = vunpack.c.l.b16 %v972
        %v1153 = vunpack.c.h.b16 %v972
        %v1154 = vunpack.c.l.b16 %v973
        %v1155 = vunpack.c.h.b16 %v973
        %v1156 = vunpack.c.l.b16 %v974
        %v1157 = vunpack.c.h.b16 %v974
        %v1158 = vunpack.c.l.b16 %v975
        %v1159 = vunpack.c.h.b16 %v975
        %v1160 = vunpack.c.l.b16 %v976
        %v1161 = vunpack.c.h.b16 %v976
        %v1162 = vunpack.c.l.b16 %v977
        %v1163 = vunpack.c.h.b16 %v977
        %v1164 = vunpack.c.l.b16 %v978
        %v1165 = vunpack.c.h.b16 %v978
        %v1166 = vunpack.c.l.b16 %v979
        %v1167 = vunpack.c.h.b16 %v979
        %v1168 = vunpack.c.l.b16 %v980
        %v1169 = vunpack.c.h.b16 %v980
        %v1170 = vunpack.c.l.b16 %v981
        %v1171 = vunpack.c.h.b16 %v981
        %v1172 = vunpack.c.l.b16 %v982
        %v1173 = vunpack.c.h.b16 %v982
        %v1174 = vunpack.c.l.b16 %v983
        %v1175 = vunpack.c.h.b16 %v983
        %v1176 = vunpack.c.l.b16 %v984
        %v1177 = vunpack.c.h.b16 %v984
        %v1178 = vunpack.c.l.b16 %v985
        %v1179 = vunpack.c.h.b16 %v985
        %v1180 = vunpack.c.l.b16 %v986
        %v1181 = vunpack.c.h.b16 %v986
        %v1182 = vunpack.c.l.b16 %v987
        %v1183 = vunpack.c.h.b16 %v987
        %v1184 = vunpack.c.l.b16 %v988
        %v1185 = vunpack.c.h.b16 %v988
        %v1186 = vunpack.c.l.b16 %v989
        %v1187 = vunpack.c.h.b16 %v989
        %v1188 = vunpack.c.l.b16 %v990
        %v1189 = vunpack.c.h.b16 %v990
        %v1190 = vunpack.c.l.b16 %v991
        %v1191 = vunpack.c.h.b16 %v991
        %v1192 = vunpack.c.l.b16 %v992
        %v1193 = vunpack.c.h.b16 %v992
        %v1194 = vunpack.c.l.b16 %v993
        %v1195 = vunpack.c.h.b16 %v993
        %v1196 = vunpack.c.l.b16 %v994
        %v1197 = vunpack.c.h.b16 %v994
        %v1198 = vunpack.c.l.b16 %v995
        %v1199 = vunpack.c.h.b16 %v995
        %v1200 = vunpack.c.l.b16 %v996
        %v1201 = vunpack.c.h.b16 %v996
        %v1202 = vunpack.c.l.b16 %v997
        %v1203 = vunpack.c.h.b16 %v997
        %v1204 = vunpack.c.l.b16 %v998
        %v1205 = vunpack.c.h.b16 %v998
        %v1206 = vunpack.c.l.b16 %v999
        %v1207 = vunpack.c.h.b16 %v999
        %v1208 = vunpack.c.l.b16 %v1000
        %v1209 = vunpack.c.h.b16 %v1000
        %v1210 = vunpack.c.l.b16 %v1001
        %v1211 = vunpack.c.h.b16 %v1001
        %v1212 = vunpack.c.l.b16 %v1002
        %v1213 = vunpack.c.h.b16 %v1002
        %v1214 = vunpack.c.l.b16 %v1003
        %v1215 = vunpack.c.h.b16 %v1003
        %v1216 = vunpack.c.l.b16 %v1004
        %v1217 = vunpack.c.h.b16 %v1004
        %v1218 = vunpack.c.l.b16 %v1005
        %v1219 = vunpack.c.h.b16 %v1005
        %v1220 = vunpack.c.l.b16 %v1006
        %v1221 = vunpack.c.h.b16 %v1006
        %v1222 = vunpack.c.l.b16 %v1007
        %v1223 = vunpack.c.h.b16 %v1007
        %v1224 = vunpack.c.l.b16 %v1008
        %v1225 = vunpack.c.h.b16 %v1008
        %v1226 = vunpack.c.l.b16 %v1009
        %v1227 = vunpack.c.h.b16 %v1009
        %v1228 = vunpack.c.l.b16 %v1010
        %v1229 = vunpack.c.h.b16 %v1010
        %v1230 = vunpack.c.l.b16 %v1011
        %v1231 = vunpack.c.h.b16 %v1011
        %v1232 = vunpack.c.l.b16 %v1012
        %v1233 = vunpack.c.h.b16 %v1012
        %v1234 = vunpack.c.l.b16 %v1013
        %v1235 = vunpack.c.h.b16 %v1013
        %v1236 = vunpack.c.l.b16 %v1014
        %v1237 = vunpack.c.h.b16 %v1014
        %v1238 = vunpack.c.l.b16 %v1015
        %v1239 = vunpack.c.h.b16 %v1015
        %v1240 = vpack.c.b16 %v1116, %v1112
        %v1241 = vpack.c.b16 %v1117, %v1113
        %v1242 = vpack.c.b16 %v1118, %v1114
        %v1243 = vpack.c.b16 %v1119, %v1115
        %v1244 = vpack.c.b16 %v1124, %v1120
        %v1245 = vpack.c.b16 %v1125, %v1121
        %v1246 = vpack.c.b16 %v1126, %v1122
        %v1247 = vpack.c.b16 %v1127, %v1123
        %v1248 = vpack.c.b16 %v1132, %v1128
        %v1249 = vpack.c.b16 %v1133, %v1129
        %v1250 = vpack.c.b16 %v1134, %v1130
        %v1251 = vpack.c.b16 %v1135, %v1131
        %v1252 = vpack.c.b16 %v1140, %v1136
        %v1253 = vpack.c.b16 %v1141, %v1137
        %v1254 = vpack.c.b16 %v1142, %v1138
        %v1255 = vpack.c.b16 %v1143, %v1139
        %v1256 = vpack.c.b16 %v1148, %v1144
        %v1257 = vpack.c.b16 %v1149, %v1145
        %v1258 = vpack.c.b16 %v1150, %v1146
        %v1259 = vpack.c.b16 %v1151, %v1147
        %v1260 = vpack.c.b16 %v1156, %v1152
        %v1261 = vpack.c.b16 %v1157, %v1153
        %v1262 = vpack.c.b16 %v1158, %v1154
        %v1263 = vpack.c.b16 %v1159, %v1155
        %v1264 = vpack.c.b16 %v1164, %v1160
        %v1265 = vpack.c.b16 %v1165, %v1161
        %v1266 = vpack.c.b16 %v1166, %v1162
        %v1267 = vpack.c.b16 %v1167, %v1163
        %v1268 = vpack.c.b16 %v1172, %v1168
        %v1269 = vpack.c.b16 %v1173, %v1169
        %v1270 = vpack.c.b16 %v1174, %v1170
        %v1271 = vpack.c.b16 %v1175, %v1171
        %v1272 = vpack.c.b16 %v1180, %v1176
        %v1273 = vpack.c.b16 %v1181, %v1177
        %v1274 = vpack.c.b16 %v1182, %v1178
        %v1275 = vpack.c.b16 %v1183, %v1179
        %v1276 = vpack.c.b16 %v1188, %v1184
        %v1277 = vpack.c.b16 %v1189, %v1185
        %v1278 = vpack.c.b16 %v1190, %v1186
        %v1279 = vpack.c.b16 %v1191, %v1187
        %v1280 = vpack.c.b16 %v1196, %v1192
        %v1281 = vpack.c.b16 %v1197, %v1193
        %v1282 = vpack.c.b16 %v1198, %v1194
        %v1283 = vpack.c.b16 %v1199, %v1195
        %v1284 = vpack.c.b16 %v1204, %v1200
        %v1285 = vpack.c.b16 %v1205, %v1201
        %v1286 = vpack.c.b16 %v1206, %v1202
        %v1287 = vpack.c.b16 %v1207, %v1203
        %v1288 = vpack.c.b16 %v1212, %v1208
        %v1289 = vpack.c.b16 %v1213, %v1209
        %v1290 = vpack.c.b16 %v1214, %v1210
        %v1291 = vpack.c.b16 %v1215, %v1211
        %v1292 = vpack.c.b16 %v1220, %v1216
        %v1293 = vpack.c.b16 %v1221, %v1217
        %v1294 = vpack.c.b16 %v1222, %v1218
        %v1295 = vpack.c.b16 %v1223, %v1219
        %v1296 = vpack.c.b16 %v1228, %v1224
        %v1297 = vpack.c.b16 %v1229, %v1225
        %v1298 = vpack.c.b16 %v1230, %v1226
        %v1299 = vpack.c.b16 %v1231, %v1227
        %v1300 = vpack.c.b16 %v1236, %v1232
        %v1301 = vpack.c.b16 %v1237, %v1233
        %v1302 = vpack.c.b16 %v1238, %v1234
        %v1303 = vpack.c.b16 %v1239, %v1235
        %1368 = vmatprep.subr.bf16.mxu0 0
        %1369 = vmatpush1.bf16.msra.mxu0 %v1023
        %1370 = vmatprep.subr.bf16.mxu0 0
        %1371 = vmatpush1.bf16.msra.mxu0 %v1022
        %1372 = vmatprep.subr.bf16.mxu0 0
        %1373 = vmatpush1.bf16.msra.mxu0 %v1021
        %1374 = vmatprep.subr.bf16.mxu0 0
        %1375 = vmatpush1.bf16.msra.mxu0 %v1020
        %1376 = vmatprep.subr.bf16.mxu0 0
        %1377 = vmatpush1.bf16.msra.mxu0 %v1019
        %1378 = vmatprep.subr.bf16.mxu0 0
        %1379 = vmatpush1.bf16.msra.mxu0 %v1018
        %1380 = vmatprep.subr.bf16.mxu0 0
        %1381 = vmatpush1.bf16.msra.mxu0 %v1017
        %1382 = vmatprep.subr.bf16.mxu0 0
        %1383 = vmatpush1.bf16.msra.mxu0 %v1016
        %1384 = vmatprep.subr.bf16.mxu0 0
        %1385 = vmatpush2.bf16.msra.mxu0 %v1031
        %1386 = vmatprep.subr.bf16.mxu0 0
        %1387 = vmatpush2.bf16.msra.mxu0 %v1030
        %1388 = vmatprep.subr.bf16.mxu0 0
        %1389 = vmatpush2.bf16.msra.mxu0 %v1029
        %1390 = vmatprep.subr.bf16.mxu0 0
        %1391 = vmatpush2.bf16.msra.mxu0 %v1028
        %1392 = vmatprep.subr.bf16.mxu0 0
        %1393 = vmatpush2.bf16.msra.mxu0 %v1027
        %1394 = vmatprep.subr.bf16.mxu0 0
        %1395 = vmatpush2.bf16.msra.mxu0 %v1026
        %1396 = vmatprep.subr.bf16.mxu0 0
        %1397 = vmatpush2.bf16.msra.mxu0 %v1025
        %1398 = vmatprep.subr.bf16.mxu0 0
        %1399 = vmatpush2.bf16.msra.mxu0 %v1024
        %1400 = vmatprep.mubr.bf16.mxu0 %v1241
        %1401 = vmatmul.mubr.bf16.gmra.mxu0 %v1240
        %v1402 = vpop.f32.mrf.mxu0
        %v1403 = vadd.f32 0.0, %v1402
        %v1404 = vpop.f32.mrf.mxu0
        %v1405 = vpop.f32.mrf.mxu0
        %v1406 = vadd.f32 0.0, %v1405
        %v1407 = vpop.f32.mrf.mxu0
        %1408 = vmatprep.mubr.bf16.mxu0 %v1245
        %1409 = vmatmul.mubr.bf16.gmra.mxu0 %v1244
        %v1410 = vpop.f32.mrf.mxu0
        %v1411 = vadd.f32 0.0, %v1410
        %v1412 = vpop.f32.mrf.mxu0
        %v1413 = vpop.f32.mrf.mxu0
        %v1414 = vadd.f32 0.0, %v1413
        %v1415 = vpop.f32.mrf.mxu0
        %1416 = vmatprep.mubr.bf16.mxu0 %v1249
        %1417 = vmatmul.mubr.bf16.gmra.mxu0 %v1248
        %v1418 = vpop.f32.mrf.mxu0
        %v1419 = vadd.f32 0.0, %v1418
        %v1420 = vpop.f32.mrf.mxu0
        %v1421 = vpop.f32.mrf.mxu0
        %v1422 = vadd.f32 0.0, %v1421
        %v1423 = vpop.f32.mrf.mxu0
        %1424 = vmatprep.mubr.bf16.mxu0 %v1253
        %1425 = vmatmul.mubr.bf16.gmra.mxu0 %v1252
        %v1426 = vpop.f32.mrf.mxu0
        %v1427 = vadd.f32 0.0, %v1426
        %v1428 = vpop.f32.mrf.mxu0
        %v1429 = vpop.f32.mrf.mxu0
        %v1430 = vadd.f32 0.0, %v1429
        %v1431 = vpop.f32.mrf.mxu0
        %1432 = vmatprep.mubr.bf16.mxu0 %v1257
        %1433 = vmatmul.mubr.bf16.gmra.mxu0 %v1256
        %v1434 = vpop.f32.mrf.mxu0
        %v1435 = vadd.f32 0.0, %v1434
        %v1436 = vpop.f32.mrf.mxu0
        %v1437 = vpop.f32.mrf.mxu0
        %v1438 = vadd.f32 0.0, %v1437
        %v1439 = vpop.f32.mrf.mxu0
        %1440 = vmatprep.mubr.bf16.mxu0 %v1261
        %1441 = vmatmul.mubr.bf16.gmra.mxu0 %v1260
        %v1442 = vpop.f32.mrf.mxu0
        %v1443 = vadd.f32 0.0, %v1442
        %v1444 = vpop.f32.mrf.mxu0
        %v1445 = vpop.f32.mrf.mxu0
        %v1446 = vadd.f32 0.0, %v1445
        %v1447 = vpop.f32.mrf.mxu0
        %1448 = vmatprep.mubr.bf16.mxu0 %v1265
        %1449 = vmatmul.mubr.bf16.gmra.mxu0 %v1264
        %v1450 = vpop.f32.mrf.mxu0
        %v1451 = vadd.f32 0.0, %v1450
        %v1452 = vpop.f32.mrf.mxu0
        %v1453 = vpop.f32.mrf.mxu0
        %v1454 = vadd.f32 0.0, %v1453
        %v1455 = vpop.f32.mrf.mxu0
        %1456 = vmatprep.mubr.bf16.mxu0 %v1269
        %1457 = vmatmul.mubr.bf16.gmra.mxu0 %v1268
        %v1458 = vpop.f32.mrf.mxu0
        %v1459 = vadd.f32 0.0, %v1458
        %v1460 = vpop.f32.mrf.mxu0
        %v1461 = vpop.f32.mrf.mxu0
        %v1462 = vadd.f32 0.0, %v1461
        %v1463 = vpop.f32.mrf.mxu0
        %1464 = vmatprep.mubr.bf16.mxu0 %v1273
        %1465 = vmatmul.mubr.bf16.gmra.mxu0 %v1272
        %v1466 = vpop.f32.mrf.mxu0
        %v1467 = vadd.f32 0.0, %v1466
        %v1468 = vpop.f32.mrf.mxu0
        %v1469 = vpop.f32.mrf.mxu0
        %v1470 = vadd.f32 0.0, %v1469
        %v1471 = vpop.f32.mrf.mxu0
        %1472 = vmatprep.mubr.bf16.mxu0 %v1277
        %1473 = vmatmul.mubr.bf16.gmra.mxu0 %v1276
        %v1474 = vpop.f32.mrf.mxu0
        %v1475 = vadd.f32 0.0, %v1474
        %v1476 = vpop.f32.mrf.mxu0
        %v1477 = vpop.f32.mrf.mxu0
        %v1478 = vadd.f32 0.0, %v1477
        %v1479 = vpop.f32.mrf.mxu0
        %1480 = vmatprep.mubr.bf16.mxu0 %v1281
        %1481 = vmatmul.mubr.bf16.gmra.mxu0 %v1280
        %v1482 = vpop.f32.mrf.mxu0
        %v1483 = vadd.f32 0.0, %v1482
        %v1484 = vpop.f32.mrf.mxu0
        %v1485 = vpop.f32.mrf.mxu0
        %v1486 = vadd.f32 0.0, %v1485
        %v1487 = vpop.f32.mrf.mxu0
        %1488 = vmatprep.mubr.bf16.mxu0 %v1285
        %1489 = vmatmul.mubr.bf16.gmra.mxu0 %v1284
        %v1490 = vpop.f32.mrf.mxu0
        %v1491 = vadd.f32 0.0, %v1490
        %v1492 = vpop.f32.mrf.mxu0
        %v1493 = vpop.f32.mrf.mxu0
        %v1494 = vadd.f32 0.0, %v1493
        %v1495 = vpop.f32.mrf.mxu0
        %1496 = vmatprep.mubr.bf16.mxu0 %v1289
        %1497 = vmatmul.mubr.bf16.gmra.mxu0 %v1288
        %v1498 = vpop.f32.mrf.mxu0
        %v1499 = vadd.f32 0.0, %v1498
        %v1500 = vpop.f32.mrf.mxu0
        %v1501 = vpop.f32.mrf.mxu0
        %v1502 = vadd.f32 0.0, %v1501
        %v1503 = vpop.f32.mrf.mxu0
        %1504 = vmatprep.mubr.bf16.mxu0 %v1293
        %1505 = vmatmul.mubr.bf16.gmra.mxu0 %v1292
        %v1506 = vpop.f32.mrf.mxu0
        %v1507 = vadd.f32 0.0, %v1506
        %v1508 = vpop.f32.mrf.mxu0
        %v1509 = vpop.f32.mrf.mxu0
        %v1510 = vadd.f32 0.0, %v1509
        %v1511 = vpop.f32.mrf.mxu0
        %1512 = vmatprep.mubr.bf16.mxu0 %v1297
        %1513 = vmatmul.mubr.bf16.gmra.mxu0 %v1296
        %v1514 = vpop.f32.mrf.mxu0
        %v1515 = vadd.f32 0.0, %v1514
        %v1516 = vpop.f32.mrf.mxu0
        %v1517 = vpop.f32.mrf.mxu0
        %v1518 = vadd.f32 0.0, %v1517
        %v1519 = vpop.f32.mrf.mxu0
        %1520 = vmatprep.mubr.bf16.mxu0 %v1301
        %1521 = vmatmul.mubr.bf16.gmra.mxu0 %v1300
        %v1522 = vpop.f32.mrf.mxu0
        %v1523 = vadd.f32 0.0, %v1522
        %v1524 = vpop.f32.mrf.mxu0
        %v1525 = vpop.f32.mrf.mxu0
        %v1526 = vadd.f32 0.0, %v1525
        %v1527 = vpop.f32.mrf.mxu0
        %1528 = vdwg.mxu0
        %1529 = vmatprep.subr.bf16.mxu0 0
        %1530 = vmatpush1.bf16.msra.mxu0 %v1039
        %1531 = vmatprep.subr.bf16.mxu0 0
        %1532 = vmatpush1.bf16.msra.mxu0 %v1038
        %1533 = vmatprep.subr.bf16.mxu0 0
        %1534 = vmatpush1.bf16.msra.mxu0 %v1037
        %1535 = vmatprep.subr.bf16.mxu0 0
        %1536 = vmatpush1.bf16.msra.mxu0 %v1036
        %1537 = vmatprep.subr.bf16.mxu0 0
        %1538 = vmatpush1.bf16.msra.mxu0 %v1035
        %1539 = vmatprep.subr.bf16.mxu0 0
        %1540 = vmatpush1.bf16.msra.mxu0 %v1034
        %1541 = vmatprep.subr.bf16.mxu0 0
        %1542 = vmatpush1.bf16.msra.mxu0 %v1033
        %1543 = vmatprep.subr.bf16.mxu0 0
        %1544 = vmatpush1.bf16.msra.mxu0 %v1032
        %1545 = vmatprep.subr.bf16.mxu0 0
        %1546 = vmatpush2.bf16.msra.mxu0 %v1047
        %1547 = vmatprep.subr.bf16.mxu0 0
        %1548 = vmatpush2.bf16.msra.mxu0 %v1046
        %1549 = vmatprep.subr.bf16.mxu0 0
        %1550 = vmatpush2.bf16.msra.mxu0 %v1045
        %1551 = vmatprep.subr.bf16.mxu0 0
        %1552 = vmatpush2.bf16.msra.mxu0 %v1044
        %1553 = vmatprep.subr.bf16.mxu0 0
        %1554 = vmatpush2.bf16.msra.mxu0 %v1043
        %1555 = vmatprep.subr.bf16.mxu0 0
        %1556 = vmatpush2.bf16.msra.mxu0 %v1042
        %1557 = vmatprep.subr.bf16.mxu0 0
        %1558 = vmatpush2.bf16.msra.mxu0 %v1041
        %1559 = vmatprep.subr.bf16.mxu0 0
        %1560 = vmatpush2.bf16.msra.mxu0 %v1040
        %1561 = vmatprep.mubr.bf16.mxu0 %v1243
        %1562 = vmatmul.mubr.bf16.gmra.mxu0 %v1242
        %v1563 = vpop.f32.mrf.mxu0
        %v1564 = vadd.f32 %v1403, %v1563
        %v1565 = vpop.f32.mrf.mxu0
        %v1566 = vpop.f32.mrf.mxu0
        %v1567 = vadd.f32 %v1406, %v1566
        %v1568 = vpop.f32.mrf.mxu0
        %1569 = vmatprep.mubr.bf16.mxu0 %v1247
        %1570 = vmatmul.mubr.bf16.gmra.mxu0 %v1246
        %v1571 = vpop.f32.mrf.mxu0
        %v1572 = vadd.f32 %v1411, %v1571
        %v1573 = vpop.f32.mrf.mxu0
        %v1574 = vpop.f32.mrf.mxu0
        %v1575 = vadd.f32 %v1414, %v1574
        %v1576 = vpop.f32.mrf.mxu0
        %1577 = vmatprep.mubr.bf16.mxu0 %v1251
        %1578 = vmatmul.mubr.bf16.gmra.mxu0 %v1250
        %v1579 = vpop.f32.mrf.mxu0
        %v1580 = vadd.f32 %v1419, %v1579
        %v1581 = vpop.f32.mrf.mxu0
        %v1582 = vpop.f32.mrf.mxu0
        %v1583 = vadd.f32 %v1422, %v1582
        %v1584 = vpop.f32.mrf.mxu0
        %1585 = vmatprep.mubr.bf16.mxu0 %v1255
        %1586 = vmatmul.mubr.bf16.gmra.mxu0 %v1254
        %v1587 = vpop.f32.mrf.mxu0
        %v1588 = vadd.f32 %v1427, %v1587
        %v1589 = vpop.f32.mrf.mxu0
        %v1590 = vpop.f32.mrf.mxu0
        %v1591 = vadd.f32 %v1430, %v1590
        %v1592 = vpop.f32.mrf.mxu0
        %1593 = vmatprep.mubr.bf16.mxu0 %v1259
        %1594 = vmatmul.mubr.bf16.gmra.mxu0 %v1258
        %v1595 = vpop.f32.mrf.mxu0
        %v1596 = vadd.f32 %v1435, %v1595
        %v1597 = vpop.f32.mrf.mxu0
        %v1598 = vpop.f32.mrf.mxu0
        %v1599 = vadd.f32 %v1438, %v1598
        %v1600 = vpop.f32.mrf.mxu0
        %1601 = vmatprep.mubr.bf16.mxu0 %v1263
        %1602 = vmatmul.mubr.bf16.gmra.mxu0 %v1262
        %v1603 = vpop.f32.mrf.mxu0
        %v1604 = vadd.f32 %v1443, %v1603
        %v1605 = vpop.f32.mrf.mxu0
        %v1606 = vpop.f32.mrf.mxu0
        %v1607 = vadd.f32 %v1446, %v1606
        %v1608 = vpop.f32.mrf.mxu0
        %1609 = vmatprep.mubr.bf16.mxu0 %v1267
        %1610 = vmatmul.mubr.bf16.gmra.mxu0 %v1266
        %v1611 = vpop.f32.mrf.mxu0
        %v1612 = vadd.f32 %v1451, %v1611
        %v1613 = vpop.f32.mrf.mxu0
        %v1614 = vpop.f32.mrf.mxu0
        %v1615 = vadd.f32 %v1454, %v1614
        %v1616 = vpop.f32.mrf.mxu0
        %1617 = vmatprep.mubr.bf16.mxu0 %v1271
        %1618 = vmatmul.mubr.bf16.gmra.mxu0 %v1270
        %v1619 = vpop.f32.mrf.mxu0
        %v1620 = vadd.f32 %v1459, %v1619
        %v1621 = vpop.f32.mrf.mxu0
        %v1622 = vpop.f32.mrf.mxu0
        %v1623 = vadd.f32 %v1462, %v1622
        %v1624 = vpop.f32.mrf.mxu0
        %1625 = vmatprep.mubr.bf16.mxu0 %v1275
        %1626 = vmatmul.mubr.bf16.gmra.mxu0 %v1274
        %v1627 = vpop.f32.mrf.mxu0
        %v1628 = vadd.f32 %v1467, %v1627
        %v1629 = vpop.f32.mrf.mxu0
        %v1630 = vpop.f32.mrf.mxu0
        %v1631 = vadd.f32 %v1470, %v1630
        %v1632 = vpop.f32.mrf.mxu0
        %1633 = vmatprep.mubr.bf16.mxu0 %v1279
        %1634 = vmatmul.mubr.bf16.gmra.mxu0 %v1278
        %v1635 = vpop.f32.mrf.mxu0
        %v1636 = vadd.f32 %v1475, %v1635
        %v1637 = vpop.f32.mrf.mxu0
        %v1638 = vpop.f32.mrf.mxu0
        %v1639 = vadd.f32 %v1478, %v1638
        %v1640 = vpop.f32.mrf.mxu0
        %1641 = vmatprep.mubr.bf16.mxu0 %v1283
        %1642 = vmatmul.mubr.bf16.gmra.mxu0 %v1282
        %v1643 = vpop.f32.mrf.mxu0
        %v1644 = vadd.f32 %v1483, %v1643
        %v1645 = vpop.f32.mrf.mxu0
        %v1646 = vpop.f32.mrf.mxu0
        %v1647 = vadd.f32 %v1486, %v1646
        %v1648 = vpop.f32.mrf.mxu0
        %1649 = vmatprep.mubr.bf16.mxu0 %v1287
        %1650 = vmatmul.mubr.bf16.gmra.mxu0 %v1286
        %v1651 = vpop.f32.mrf.mxu0
        %v1652 = vadd.f32 %v1491, %v1651
        %v1653 = vpop.f32.mrf.mxu0
        %v1654 = vpop.f32.mrf.mxu0
        %v1655 = vadd.f32 %v1494, %v1654
        %v1656 = vpop.f32.mrf.mxu0
        %1657 = vmatprep.mubr.bf16.mxu0 %v1291
        %1658 = vmatmul.mubr.bf16.gmra.mxu0 %v1290
        %v1659 = vpop.f32.mrf.mxu0
        %v1660 = vadd.f32 %v1499, %v1659
        %v1661 = vpop.f32.mrf.mxu0
        %v1662 = vpop.f32.mrf.mxu0
        %v1663 = vadd.f32 %v1502, %v1662
        %v1664 = vpop.f32.mrf.mxu0
        %1665 = vmatprep.mubr.bf16.mxu0 %v1295
        %1666 = vmatmul.mubr.bf16.gmra.mxu0 %v1294
        %v1667 = vpop.f32.mrf.mxu0
        %v1668 = vadd.f32 %v1507, %v1667
        %v1669 = vpop.f32.mrf.mxu0
        %v1670 = vpop.f32.mrf.mxu0
        %v1671 = vadd.f32 %v1510, %v1670
        %v1672 = vpop.f32.mrf.mxu0
        %1673 = vmatprep.mubr.bf16.mxu0 %v1299
        %1674 = vmatmul.mubr.bf16.gmra.mxu0 %v1298
        %v1675 = vpop.f32.mrf.mxu0
        %v1676 = vadd.f32 %v1515, %v1675
        %v1677 = vpop.f32.mrf.mxu0
        %v1678 = vpop.f32.mrf.mxu0
        %v1679 = vadd.f32 %v1518, %v1678
        %v1680 = vpop.f32.mrf.mxu0
        %1681 = vmatprep.mubr.bf16.mxu0 %v1303
        %1682 = vmatmul.mubr.bf16.gmra.mxu0 %v1302
        %v1683 = vpop.f32.mrf.mxu0
        %v1684 = vadd.f32 %v1523, %v1683
        %v1685 = vpop.f32.mrf.mxu0
        %v1686 = vpop.f32.mrf.mxu0
        %v1687 = vadd.f32 %v1526, %v1686
        %v1688 = vpop.f32.mrf.mxu0
        %1689 = vdwg.mxu0
        %v1690 = vadd.f32 %v920, %v1564
        %v1691 = vadd.f32 %v921, %v1567
        %v1692 = vadd.f32 %v922, %v1572
        %v1693 = vadd.f32 %v923, %v1575
        %v1694 = vadd.f32 %v924, %v1580
        %v1695 = vadd.f32 %v925, %v1583
        %v1696 = vadd.f32 %v926, %v1588
        %v1697 = vadd.f32 %v927, %v1591
        %v1698 = vadd.f32 %v928, %v1596
        %v1699 = vadd.f32 %v929, %v1599
        %v1700 = vadd.f32 %v930, %v1604
        %v1701 = vadd.f32 %v931, %v1607
        %v1702 = vadd.f32 %v932, %v1612
        %v1703 = vadd.f32 %v933, %v1615
        %v1704 = vadd.f32 %v934, %v1620
        %v1705 = vadd.f32 %v935, %v1623
        %v1706 = vadd.f32 %v936, %v1628
        %v1707 = vadd.f32 %v937, %v1631
        %v1708 = vadd.f32 %v938, %v1636
        %v1709 = vadd.f32 %v939, %v1639
        %v1710 = vadd.f32 %v940, %v1644
        %v1711 = vadd.f32 %v941, %v1647
        %v1712 = vadd.f32 %v942, %v1652
        %v1713 = vadd.f32 %v943, %v1655
        %v1714 = vadd.f32 %v944, %v1660
        %v1715 = vadd.f32 %v945, %v1663
        %v1716 = vadd.f32 %v946, %v1668
        %v1717 = vadd.f32 %v947, %v1671
        %v1718 = vadd.f32 %v948, %v1676
        %v1719 = vadd.f32 %v949, %v1679
        %v1720 = vadd.f32 %v950, %v1684
        %v1721 = vadd.f32 %v951, %v1687
        %1722 = vst [vmem:[#allocation2] sm:$0xff] %v1690
        %1723 = vst [vmem:[#allocation2 + $0x8] sm:$0xff] %v1691
        %1724 = vst [vmem:[#allocation2 + $0x10] sm:$0xff] %v1692
        %1725 = vst [vmem:[#allocation2 + $0x18] sm:$0xff] %v1693
        %1726 = vst [vmem:[#allocation2 + $0x20] sm:$0xff] %v1694
        %1727 = vst [vmem:[#allocation2 + $0x28] sm:$0xff] %v1695
        %1728 = vst [vmem:[#allocation2 + $0x30] sm:$0xff] %v1696
        %1729 = vst [vmem:[#allocation2 + $0x38] sm:$0xff] %v1697
        %1730 = vst [vmem:[#allocation2 + $0x40] sm:$0xff] %v1698
        %1731 = vst [vmem:[#allocation2 + $0x48] sm:$0xff] %v1699
        %1732 = vst [vmem:[#allocation2 + $0x50] sm:$0xff] %v1700
        %1733 = vst [vmem:[#allocation2 + $0x58] sm:$0xff] %v1701
        %1734 = vst [vmem:[#allocation2 + $0x60] sm:$0xff] %v1702
        %1735 = vst [vmem:[#allocation2 + $0x68] sm:$0xff] %v1703
        %1736 = vst [vmem:[#allocation2 + $0x70] sm:$0xff] %v1704
        %1737 = vst [vmem:[#allocation2 + $0x78] sm:$0xff] %v1705
        %1738 = vst [vmem:[#allocation2 + $0x80] sm:$0xff] %v1706
        %1739 = vst [vmem:[#allocation2 + $0x88] sm:$0xff] %v1707
        %1740 = vst [vmem:[#allocation2 + $0x90] sm:$0xff] %v1708
        %1741 = vst [vmem:[#allocation2 + $0x98] sm:$0xff] %v1709
        %1742 = vst [vmem:[#allocation2 + $0xa0] sm:$0xff] %v1710
        %1743 = vst [vmem:[#allocation2 + $0xa8] sm:$0xff] %v1711
        %1744 = vst [vmem:[#allocation2 + $0xb0] sm:$0xff] %v1712
        %1745 = vst [vmem:[#allocation2 + $0xb8] sm:$0xff] %v1713
        %1746 = vst [vmem:[#allocation2 + $0xc0] sm:$0xff] %v1714
        %1747 = vst [vmem:[#allocation2 + $0xc8] sm:$0xff] %v1715
        %1748 = vst [vmem:[#allocation2 + $0xd0] sm:$0xff] %v1716
        %1749 = vst [vmem:[#allocation2 + $0xd8] sm:$0xff] %v1717
        %1750 = vst [vmem:[#allocation2 + $0xe0] sm:$0xff] %v1718
        %1751 = vst [vmem:[#allocation2 + $0xe8] sm:$0xff] %v1719
        %1752 = vst [vmem:[#allocation2 + $0xf0] sm:$0xff] %v1720
        %1753 = vst [vmem:[#allocation2 + $0xf8] sm:$0xff] %v1721
        // Predicated region
        $region53: #{tpu_custom_call.1} parent=35 // pred_check
          %p1754 = pneg %p275
        $region54: #{tpu_custom_call.1} parent=35 // pred_check_branch
          %1756 = sbr.rel (%p1754) target = $region56
        $region55: #{tpu_custom_call.1} parent=35 // pred_region
          %v1757 = vld [vmem:[#allocation2] sm:$0xff]
          %v1758 = vld [vmem:[#allocation2 + $0x8] sm:$0xff]
          %v1759 = vld [vmem:[#allocation2 + $0x10] sm:$0xff]
          %v1760 = vld [vmem:[#allocation2 + $0x18] sm:$0xff]
          %v1761 = vld [vmem:[#allocation2 + $0x20] sm:$0xff]
          %v1762 = vld [vmem:[#allocation2 + $0x28] sm:$0xff]
          %v1763 = vld [vmem:[#allocation2 + $0x30] sm:$0xff]
          %v1764 = vld [vmem:[#allocation2 + $0x38] sm:$0xff]
          %v1765 = vld [vmem:[#allocation2 + $0x40] sm:$0xff]
          %v1766 = vld [vmem:[#allocation2 + $0x48] sm:$0xff]
          %v1767 = vld [vmem:[#allocation2 + $0x50] sm:$0xff]
          %v1768 = vld [vmem:[#allocation2 + $0x58] sm:$0xff]
          %v1769 = vld [vmem:[#allocation2 + $0x60] sm:$0xff]
          %v1770 = vld [vmem:[#allocation2 + $0x68] sm:$0xff]
          %v1771 = vld [vmem:[#allocation2 + $0x70] sm:$0xff]
          %v1772 = vld [vmem:[#allocation2 + $0x78] sm:$0xff]
          %v1773 = vld [vmem:[#allocation2 + $0x80] sm:$0xff]
          %v1774 = vld [vmem:[#allocation2 + $0x88] sm:$0xff]
          %v1775 = vld [vmem:[#allocation2 + $0x90] sm:$0xff]
          %v1776 = vld [vmem:[#allocation2 + $0x98] sm:$0xff]
          %v1777 = vld [vmem:[#allocation2 + $0xa0] sm:$0xff]
          %v1778 = vld [vmem:[#allocation2 + $0xa8] sm:$0xff]
          %v1779 = vld [vmem:[#allocation2 + $0xb0] sm:$0xff]
          %v1780 = vld [vmem:[#allocation2 + $0xb8] sm:$0xff]
          %v1781 = vld [vmem:[#allocation2 + $0xc0] sm:$0xff]
          %v1782 = vld [vmem:[#allocation2 + $0xc8] sm:$0xff]
          %v1783 = vld [vmem:[#allocation2 + $0xd0] sm:$0xff]
          %v1784 = vld [vmem:[#allocation2 + $0xd8] sm:$0xff]
          %v1785 = vld [vmem:[#allocation2 + $0xe0] sm:$0xff]
          %v1786 = vld [vmem:[#allocation2 + $0xe8] sm:$0xff]
          %v1787 = vld [vmem:[#allocation2 + $0xf0] sm:$0xff]
          %v1788 = vld [vmem:[#allocation2 + $0xf8] sm:$0xff]
          %v1789 = vld [vmem:[%s3] sm:$0x1]
          %v1791 = vlaneseq
          %v1792 = vshrl.u32 %v1791, 7
          %v1793 = vsub.s32 0, %v1792
          %v1794 = vrot.slane %v1789, %v1793
          %v1796 = vadd.f32 %v1757, %v1794
          %v1797 = vadd.f32 %v1758, %v1794
          %v1798 = vadd.f32 %v1759, %v1794
          %v1799 = vadd.f32 %v1760, %v1794
          %v1800 = vadd.f32 %v1761, %v1794
          %v1801 = vadd.f32 %v1762, %v1794
          %v1802 = vadd.f32 %v1763, %v1794
          %v1803 = vadd.f32 %v1764, %v1794
          %v1804 = vadd.f32 %v1765, %v1794
          %v1805 = vadd.f32 %v1766, %v1794
          %v1806 = vadd.f32 %v1767, %v1794
          %v1807 = vadd.f32 %v1768, %v1794
          %v1808 = vadd.f32 %v1769, %v1794
          %v1809 = vadd.f32 %v1770, %v1794
          %v1810 = vadd.f32 %v1771, %v1794
          %v1811 = vadd.f32 %v1772, %v1794
          %v1812 = vadd.f32 %v1773, %v1794
          %v1813 = vadd.f32 %v1774, %v1794
          %v1814 = vadd.f32 %v1775, %v1794
          %v1815 = vadd.f32 %v1776, %v1794
          %v1816 = vadd.f32 %v1777, %v1794
          %v1817 = vadd.f32 %v1778, %v1794
          %v1818 = vadd.f32 %v1779, %v1794
          %v1819 = vadd.f32 %v1780, %v1794
          %v1820 = vadd.f32 %v1781, %v1794
          %v1821 = vadd.f32 %v1782, %v1794
          %v1822 = vadd.f32 %v1783, %v1794
          %v1823 = vadd.f32 %v1784, %v1794
          %v1824 = vadd.f32 %v1785, %v1794
          %v1825 = vadd.f32 %v1786, %v1794
          %v1826 = vadd.f32 %v1787, %v1794
          %v1827 = vadd.f32 %v1788, %v1794
          %v1828 = vmax.f32 %v1796, 0.0
          %v1829 = vmax.f32 %v1797, 0.0
          %v1830 = vmax.f32 %v1798, 0.0
          %v1831 = vmax.f32 %v1799, 0.0
          %v1832 = vmax.f32 %v1800, 0.0
          %v1833 = vmax.f32 %v1801, 0.0
          %v1834 = vmax.f32 %v1802, 0.0
          %v1835 = vmax.f32 %v1803, 0.0
          %v1836 = vmax.f32 %v1804, 0.0
          %v1837 = vmax.f32 %v1805, 0.0
          %v1838 = vmax.f32 %v1806, 0.0
          %v1839 = vmax.f32 %v1807, 0.0
          %v1840 = vmax.f32 %v1808, 0.0
          %v1841 = vmax.f32 %v1809, 0.0
          %v1842 = vmax.f32 %v1810, 0.0
          %v1843 = vmax.f32 %v1811, 0.0
          %v1844 = vmax.f32 %v1812, 0.0
          %v1845 = vmax.f32 %v1813, 0.0
          %v1846 = vmax.f32 %v1814, 0.0
          %v1847 = vmax.f32 %v1815, 0.0
          %v1848 = vmax.f32 %v1816, 0.0
          %v1849 = vmax.f32 %v1817, 0.0
          %v1850 = vmax.f32 %v1818, 0.0
          %v1851 = vmax.f32 %v1819, 0.0
          %v1852 = vmax.f32 %v1820, 0.0
          %v1853 = vmax.f32 %v1821, 0.0
          %v1854 = vmax.f32 %v1822, 0.0
          %v1855 = vmax.f32 %v1823, 0.0
          %v1856 = vmax.f32 %v1824, 0.0
          %v1857 = vmax.f32 %v1825, 0.0
          %v1858 = vmax.f32 %v1826, 0.0
          %v1859 = vmax.f32 %v1827, 0.0
          %v1860 = vpack.c.bf16 %v1829, %v1828
          %v1861 = vpack.c.bf16 %v1831, %v1830
          %v1862 = vpack.c.bf16 %v1833, %v1832
          %v1863 = vpack.c.bf16 %v1835, %v1834
          %v1864 = vpack.c.bf16 %v1837, %v1836
          %v1865 = vpack.c.bf16 %v1839, %v1838
          %v1866 = vpack.c.bf16 %v1841, %v1840
          %v1867 = vpack.c.bf16 %v1843, %v1842
          %v1868 = vpack.c.bf16 %v1845, %v1844
          %v1869 = vpack.c.bf16 %v1847, %v1846
          %v1870 = vpack.c.bf16 %v1849, %v1848
          %v1871 = vpack.c.bf16 %v1851, %v1850
          %v1872 = vpack.c.bf16 %v1853, %v1852
          %v1873 = vpack.c.bf16 %v1855, %v1854
          %v1874 = vpack.c.bf16 %v1857, %v1856
          %v1875 = vpack.c.bf16 %v1859, %v1858
          %v1892 = vunpack.c.l.b16 %v1860
          %v1893 = vunpack.c.h.b16 %v1860
          %v1894 = vunpack.c.l.b16 %v1861
          %v1895 = vunpack.c.h.b16 %v1861
          %v1896 = vunpack.c.l.b16 %v1862
          %v1897 = vunpack.c.h.b16 %v1862
          %v1898 = vunpack.c.l.b16 %v1863
          %v1899 = vunpack.c.h.b16 %v1863
          %v1900 = vunpack.c.l.b16 %v1864
          %v1901 = vunpack.c.h.b16 %v1864
          %v1902 = vunpack.c.l.b16 %v1865
          %v1903 = vunpack.c.h.b16 %v1865
          %v1904 = vunpack.c.l.b16 %v1866
          %v1905 = vunpack.c.h.b16 %v1866
          %v1906 = vunpack.c.l.b16 %v1867
          %v1907 = vunpack.c.h.b16 %v1867
          %v1908 = vunpack.c.l.b16 %v1868
          %v1909 = vunpack.c.h.b16 %v1868
          %v1910 = vunpack.c.l.b16 %v1869
          %v1911 = vunpack.c.h.b16 %v1869
          %v1912 = vunpack.c.l.b16 %v1870
          %v1913 = vunpack.c.h.b16 %v1870
          %v1914 = vunpack.c.l.b16 %v1871
          %v1915 = vunpack.c.h.b16 %v1871
          %v1916 = vunpack.c.l.b16 %v1872
          %v1917 = vunpack.c.h.b16 %v1872
          %v1918 = vunpack.c.l.b16 %v1873
          %v1919 = vunpack.c.h.b16 %v1873
          %v1920 = vunpack.c.l.b16 %v1874
          %v1921 = vunpack.c.h.b16 %v1874
          %v1922 = vunpack.c.l.b16 %v1875
          %v1923 = vunpack.c.h.b16 %v1875
          %v1924 = vpack.c.b16 %v1892, %v1892
          %v1925 = vpack.c.b16 %v1893, %v1893
          %v1926 = vpack.c.b16 %v1894, %v1894
          %v1927 = vpack.c.b16 %v1895, %v1895
          %v1928 = vpack.c.b16 %v1896, %v1896
          %v1929 = vpack.c.b16 %v1897, %v1897
          %v1930 = vpack.c.b16 %v1898, %v1898
          %v1931 = vpack.c.b16 %v1899, %v1899
          %v1932 = vpack.c.b16 %v1900, %v1900
          %v1933 = vpack.c.b16 %v1901, %v1901
          %v1934 = vpack.c.b16 %v1902, %v1902
          %v1935 = vpack.c.b16 %v1903, %v1903
          %v1936 = vpack.c.b16 %v1904, %v1904
          %v1937 = vpack.c.b16 %v1905, %v1905
          %v1938 = vpack.c.b16 %v1906, %v1906
          %v1939 = vpack.c.b16 %v1907, %v1907
          %v1940 = vpack.c.b16 %v1908, %v1908
          %v1941 = vpack.c.b16 %v1909, %v1909
          %v1942 = vpack.c.b16 %v1910, %v1910
          %v1943 = vpack.c.b16 %v1911, %v1911
          %v1944 = vpack.c.b16 %v1912, %v1912
          %v1945 = vpack.c.b16 %v1913, %v1913
          %v1946 = vpack.c.b16 %v1914, %v1914
          %v1947 = vpack.c.b16 %v1915, %v1915
          %v1948 = vpack.c.b16 %v1916, %v1916
          %v1949 = vpack.c.b16 %v1917, %v1917
          %v1950 = vpack.c.b16 %v1918, %v1918
          %v1951 = vpack.c.b16 %v1919, %v1919
          %v1952 = vpack.c.b16 %v1920, %v1920
          %v1953 = vpack.c.b16 %v1921, %v1921
          %v1954 = vpack.c.b16 %v1922, %v1922
          %v1955 = vpack.c.b16 %v1923, %v1923
          %1988 = vst [vmem:[%s269] sm:$0xf] %v1924
          %1989 = vst [vmem:[%s269 + $0x4] sm:$0xf] %v1925
          %1990 = vst [vmem:[%s269 + $0x8] sm:$0xf] %v1926
          %1991 = vst [vmem:[%s269 + $0xc] sm:$0xf] %v1927
          %1992 = vst [vmem:[%s269 + $0x10] sm:$0xf] %v1928
          %1993 = vst [vmem:[%s269 + $0x14] sm:$0xf] %v1929
          %1994 = vst [vmem:[%s269 + $0x18] sm:$0xf] %v1930
          %1995 = vst [vmem:[%s269 + $0x1c] sm:$0xf] %v1931
          %1996 = vst [vmem:[%s269 + $0x20] sm:$0xf] %v1932
          %1997 = vst [vmem:[%s269 + $0x24] sm:$0xf] %v1933
          %1998 = vst [vmem:[%s269 + $0x28] sm:$0xf] %v1934
          %1999 = vst [vmem:[%s269 + $0x2c] sm:$0xf] %v1935
          %2000 = vst [vmem:[%s269 + $0x30] sm:$0xf] %v1936
          %2001 = vst [vmem:[%s269 + $0x34] sm:$0xf] %v1937
          %2002 = vst [vmem:[%s269 + $0x38] sm:$0xf] %v1938
          %2003 = vst [vmem:[%s269 + $0x3c] sm:$0xf] %v1939
          %2004 = vst [vmem:[%s269 + $0x40] sm:$0xf] %v1940
          %2005 = vst [vmem:[%s269 + $0x44] sm:$0xf] %v1941
          %2006 = vst [vmem:[%s269 + $0x48] sm:$0xf] %v1942
          %2007 = vst [vmem:[%s269 + $0x4c] sm:$0xf] %v1943
          %2008 = vst [vmem:[%s269 + $0x50] sm:$0xf] %v1944
          %2009 = vst [vmem:[%s269 + $0x54] sm:$0xf] %v1945
          %2010 = vst [vmem:[%s269 + $0x58] sm:$0xf] %v1946
          %2011 = vst [vmem:[%s269 + $0x5c] sm:$0xf] %v1947
          %2012 = vst [vmem:[%s269 + $0x60] sm:$0xf] %v1948
          %2013 = vst [vmem:[%s269 + $0x64] sm:$0xf] %v1949
          %2014 = vst [vmem:[%s269 + $0x68] sm:$0xf] %v1950
          %2015 = vst [vmem:[%s269 + $0x6c] sm:$0xf] %v1951
          %2016 = vst [vmem:[%s269 + $0x70] sm:$0xf] %v1952
          %2017 = vst [vmem:[%s269 + $0x74] sm:$0xf] %v1953
          %2018 = vst [vmem:[%s269 + $0x78] sm:$0xf] %v1954
          %2019 = vst [vmem:[%s269 + $0x7c] sm:$0xf] %v1955
        $region56: #{tpu_custom_call.1} parent=35 // pred_fallthru
          _
        %s2020 = sand.u32 %s138, 1
        %s2021 = scalar_lea.sflag [#allocation5], %s2020
        %s2022 = sand.u32 %s138, 1
        %s2023 = smul.addr %s2022, 128
        %s2024 = scalar_lea.vmem [#allocation9], %s2023
        // Predicated region
        $region57: #{tpu_custom_call.1} parent=35 // pred_check
          %p2025 = pneg %p148
        $region58: #{tpu_custom_call.1} parent=35 // pred_check_branch
          %2027 = sbr.rel (%p2025) target = $region60
        $region59: #{tpu_custom_call.1} parent=35 // pred_region
          %s2028 = smul.u32 32, %s26
          %s2030 = ssub.s32 2048, 2048
          %2031 = vsyncadd %s2021, %s2030
          %s2032 = smul.addr %s2028, 64
          %s2033 = scalar_lea.hbm %s4, %s2032
          %s2034 = sshll.u32 %s2024, 4
          %s2035 = int_to_ptr.vmem [resolvable:$true] %s2034
          %2040 = dma.vmem_to_hbm [thread:$0]  %s2035, 2048, %s2033, %s2021, 64, 64, 4
        $region60: #{tpu_custom_call.1} parent=35 // pred_fallthru
          _
      $region36: #{tpu_custom_call.1} parent=5 // pred_fallthru
        _
      %p2041 = scmp.le.s32.totalorder 2, %s17
      // Predicated region
      $region61: #{tpu_custom_call.1} parent=5 // pred_check
        %p2042 = pneg %p2041
      $region62: #{tpu_custom_call.1} parent=5 // pred_check_branch
        %2044 = sbr.rel (%p2042) target = $region64
      $region63: #{tpu_custom_call.1} parent=5 // pred_region
        %s2045 = ssub.s32 %s17, 2
        // Predicated region
        $region65: #{tpu_custom_call.1} parent=63 // pred_check
          %p2046 = pneg %p154
        $region66: #{tpu_custom_call.1} parent=63 // pred_check_branch
          %2048 = sbr.rel (%p2046) target = $region68
        $region67: #{tpu_custom_call.1} parent=63 // pred_region
          %s2049 = sand.u32 %s139, 1
          %s2050 = scalar_lea.sflag [#allocation5], %s2049
          %s2051 = sand.u32 %s139, 1
          %s2052 = smul.addr %s2051, 128
          %s2053 = scalar_lea.vmem [#allocation9], %s2052
          %2054 = dma.done %s2050, 2048
        $region68: #{tpu_custom_call.1} parent=63 // pred_fallthru
          _
      $region64: #{tpu_custom_call.1} parent=5 // pred_fallthru
        _
    $region6: #{tpu_custom_call.1} parent=1 // loop_footer
      %s21 = sadd.s32 1, %s17
    $region7: #{tpu_custom_call.1} parent=1 // loop_footer_branch
      %16 = sbr.rel target = $region3
    $region8: #{tpu_custom_call.1} parent=1 // loop_exit
      _
    %2055 = vsyncpa [#allocation4], 1
    %s2056 = scalar_lea.sflag [#allocation4], 1
    %2057 = vsyncpa %s2056, 1
    %2058 = vsyncpa [#allocation7], 1
    %2059 = vsyncpa [#allocation5], 1
    %s2060 = scalar_lea.sflag [#allocation5], 1
    %2061 = vsyncpa %s2060, 1

</llo_original>
